<compile_context>
chip_gen: v7x
topology: tpu7x:2x2x1
jax: 0.10.0
libtpu: 0.0.40
codegen_flags: <defaults>
</compile_context>

<pallas_src>
import functools

import jax
import jax.numpy as jnp
from jax.experimental import pallas as pl
from jax.experimental.pallas import tpu as pltpu

# ----------------------------- configuration -------------------------------
D = 16        # input dimension
M = 32        # hidden dimension
K = 8         # output dimension
L = 3         # number of hidden layers
BETA = 1.0    # residual scale
ACTIVATION = "relu"   # one of: 'linear', 'relu', 'leaky_relu', 'gelu'
NEG_SLOPE = 0.01      # only used for leaky_relu

BATCH = 1024  # demo batch
TILE_B = 512  # batch tile in the LANE dimension (multiple of 128; 512 keeps
              # per-step work well above the ~0.35us grid overhead and gives
              # grid_b == 2 for the demo batch -> both v7x TensorCores busy)

assert D <= M, "rectangular-identity skip assumes d <= m (as in the torch module)"
assert TILE_B % 128 == 0


def _activ(h):
    if ACTIVATION == "linear":
        return h
    if ACTIVATION == "relu":
        return jnp.maximum(h, 0.0)
    if ACTIVATION == "leaky_relu":
        return jnp.where(h >= 0.0, h, NEG_SLOPE * h)
    if ACTIVATION == "gelu":
        # torch.nn.GELU() default is the exact (erf) formulation
        return jax.nn.gelu(h, approximate=False)
    raise ValueError(f"unknown activation {ACTIVATION}")


def _scale(v):
    """beta * v, skipping the multiply when beta == 1 (trace-time guard)."""
    return v if BETA == 1.0 else BETA * v


# ------------------------------- the kernel --------------------------------
def _fully_skip_kernel(x_ref, w_ref, b_ref, o_ref):
    """One batch tile, feature-major (batch lives in the lane dimension).

    x_ref : (D, TILE_B)      input tile, NOT zero-padded (saves HBM traffic)
    w_ref : (L+2, M, M)      (out, in) orientation. [0] = W_in + beta*eye(M, D)
                             zero-padded to M input cols, [1..L] = hidden,
                             [L+1] = W_out zero-padded to M output rows.
    b_ref : (L+2, M, 1)      biases (broadcast along lanes), b_out zero-padded.
    o_ref : (K, TILE_B)      lane-dense output tile.
    """
    x = x_ref[...]                                               # (D, B)

    # Padded input (the identity-skip image of x), built once in VMEM.
    xp = jnp.concatenate(
        [x, jnp.zeros((M - D, x.shape[1]), x.dtype)], axis=0)    # (M, B)

    # Input layer: beta*eye is folded into w_ref[0]; its cols >= D are zero,
    # so w_ref[0] @ xp == (W_in + beta*eye(M, D)) @ x.
    h = _activ(jnp.dot(w_ref[0], xp, preferred_element_type=jnp.float32)
               + b_ref[0])                                       # (M, B)

    # Running skip term: beta*pad(x) + beta*sum(hidden activations so far).
    skip = _scale(xp) + _scale(h)

    # Hidden layers, statically unrolled (L is small); h -> dot -> activ is a
    # true data dependence, let the LLO scheduler interleave.
    for i in range(L):
        h = _activ(jnp.dot(w_ref[i + 1], h, preferred_element_type=jnp.float32)
                   + b_ref[i + 1] + skip)
        skip = skip + _scale(h)

    # Output layer: rows >= K of w_ref[L+1]/b_ref[L+1] are zero; keep only the
    # first K rows -> (K, TILE_B) store is 8 sublanes x full lanes (dense vst).
    out_full = jnp.dot(w_ref[L + 1], h, preferred_element_type=jnp.float32) \
        + b_ref[L + 1]                                           # (M, B)
    o_ref[...] = out_full[:K, :].astype(o_ref.dtype)


# ------------------------- host-side parameter pack -------------------------
def pack_params(w_in, b_in, w_h, b_h, w_out, b_out):
    """Fold beta*eye into W_in and pack everything into two arrays.

    Called ONCE (outside the per-call forward path). Torch layouts expected:
    w_in (M, D), b_in (M,), w_h (L, M, M) out-by-in, b_h (L, M),
    w_out (K, M), b_out (K,).
    """
    w_in_eff = w_in + BETA * jnp.eye(M, D, dtype=jnp.float32)          # (M, D)
    w0 = jnp.zeros((M, M), jnp.float32).at[:, :D].set(w_in_eff)        # (M, M)
    w_last = jnp.zeros((M, M), jnp.float32).at[:K, :].set(w_out)       # (M, M)
    w_packed = jnp.concatenate([w0[None], w_h, w_last[None]], axis=0)  # (L+2,M,M)

    b0 = b_in.reshape(M, 1)
    b_hid = b_h.reshape(L, M, 1)
    b_last = jnp.zeros((M, 1), jnp.float32).at[:K, 0].set(b_out)
    b_packed = jnp.concatenate([b0[None], b_hid, b_last[None]], axis=0)  # (L+2,M,1)
    return w_packed, b_packed


# ------------------------------ jitted forward -------------------------------
@functools.partial(jax.jit, static_argnames=("tile_b",))
def fully_skip_forward(x, w_packed, b_packed, *, tile_b=TILE_B):
    """x: (B, D) f32; w_packed/b_packed from pack_params. Returns (B, K)."""
    batch = x.shape[0]

    # Batch goes to the lane dimension: pad to a tile multiple and transpose.
    pad_b = (-batch) % tile_b
    xt = jnp.pad(x, ((0, pad_b), (0, 0))).T           # (D, Bp) feature-major
    bp = xt.shape[1]
    grid_b = bp // tile_b                             # keep even-ish for v7x

    out_t = pl.pallas_call(
        _fully_skip_kernel,
        out_shape=jax.ShapeDtypeStruct((K, bp), jnp.float32),
        grid=(grid_b,),
        in_specs=[
            pl.BlockSpec((D, tile_b), lambda i: (0, i)),        # x tile (streamed)
            pl.BlockSpec((L + 2, M, M), lambda i: (0, 0, 0)),   # weights (resident)
            pl.BlockSpec((L + 2, M, 1), lambda i: (0, 0, 0)),   # biases  (resident)
        ],
        out_specs=pl.BlockSpec((K, tile_b), lambda i: (0, i)),
        compiler_params=pltpu.CompilerParams(
            dimension_semantics=("parallel",)),
    )(xt, w_packed, b_packed)

    return out_t[:, :batch].T                          # back to (B, K)


# --------------------------- pure-JAX reference -----------------------------
def _reference(x, w_in, b_in, w_h, b_h, w_out, b_out):
    eye_dm = jnp.eye(D, M, dtype=jnp.float32)
    skip = BETA * (x @ eye_dm)
    h = _activ(x @ w_in.T + b_in + skip)
    skip = skip + BETA * h
    for i in range(L):
        h = _activ(h @ w_h[i].T + b_h[i] + skip)
        skip = skip + BETA * h
    return h @ w_out.T + b_out


# ---------------------------------- main ------------------------------------
if __name__ == "__main__":
    key = jax.random.PRNGKey(0)
    ks = jax.random.split(key, 8)

    # Deterministic synthetic parameters in torch layout (out_features, in_features).
    w_in = jax.random.normal(ks[0], (M, D), jnp.float32) * (2.0 / D) ** 0.5
    b_in = jax.random.normal(ks[1], (M,), jnp.float32)
    w_h = jax.random.normal(ks[2], (L, M, M), jnp.float32) * (2.0 / M) ** 0.5
    b_h = jax.random.normal(ks[3], (L, M), jnp.float32)
    w_out = jax.random.normal(ks[4], (K, M), jnp.float32) * (2.0 / M) ** 0.5
    b_out = jax.random.normal(ks[5], (K,), jnp.float32)

    x = jax.random.normal(ks[6], (BATCH, D), jnp.float32)

    # Pack once (hoisted out of the per-call forward path).
    w_packed, b_packed = pack_params(w_in, b_in, w_h, b_h, w_out, b_out)
    w_packed, b_packed = jax.block_until_ready((w_packed, b_packed))

    out = fully_skip_forward(x, w_packed, b_packed)
    out = jax.block_until_ready(out)

    ref = _reference(x, w_in, b_in, w_h, b_h, w_out, b_out)
    assert out.shape == (BATCH, K), out.shape
    assert jnp.allclose(out, ref, atol=1e-3, rtol=1e-4), "mismatch vs reference"

    print("KERNEL_OK")
</pallas_src>

<mosaic_0001>
module attributes {stable_mosaic.version = 11 : i64} {
  func.func @_fully_skip_kernel(%arg0: i32, %arg1: memref<16x512xf32, #tpu.memory_space<vmem>>, %arg2: memref<5x32x32xf32, #tpu.memory_space<vmem>>, %arg3: memref<5x32x1xf32, #tpu.memory_space<vmem>>, %arg4: memref<8x512xf32, #tpu.memory_space<vmem>>) attributes {dimension_semantics = [#tpu.dimension_semantics<parallel>], iteration_bounds = array<i64: 2>, scalar_prefetch = 0 : i64, scratch_operands = 0 : i64, tpu.core_type = #tpu.core_type<tc>, window_params = [{transform_indices = @transform_0, window_bounds = array<i64: 16, 512>}, {pipeline_mode = #tpu.pipeline_mode<synchronous>, transform_indices = @transform_1, window_bounds = array<i64: 5, 32, 32>}, {pipeline_mode = #tpu.pipeline_mode<synchronous>, transform_indices = @transform_2, window_bounds = array<i64: 5, 32, 1>}, {transform_indices = @transform_3, window_bounds = array<i64: 8, 512>}]} {
    %c0 = arith.constant 0 : index
    %c0_0 = arith.constant 0 : index
    %0 = vector.load %arg1[%c0, %c0_0] : memref<16x512xf32, #tpu.memory_space<vmem>>, vector<16x512xf32>
    %cst = arith.constant 0.000000e+00 : f32
    %1 = vector.broadcast %cst : f32 to vector<16x512xf32>
    %2 = tpu.concatenate %0, %1 in 0 : vector<16x512xf32>, vector<16x512xf32> -> vector<32x512xf32>
    %c0_1 = arith.constant 0 : index
    %c0_2 = arith.constant 0 : index
    %c0_3 = arith.constant 0 : index
    %3 = vector.load %arg2[%c0_1, %c0_2, %c0_3] : memref<5x32x32xf32, #tpu.memory_space<vmem>>, vector<1x32x32xf32>
    %4 = vector.shape_cast %3 : vector<1x32x32xf32> to vector<32x32xf32>
    %cst_4 = arith.constant dense<0.000000e+00> : vector<32x512xf32>
    %5 = tpu.matmul %4, %2, %cst_4 {dimension_numbers = #tpu.dot_dimension_numbers<[1], [0], [0], [1], [0, 0, 1, 1], [], []>} : vector<32x32xf32>, vector<32x512xf32>, vector<32x512xf32> -> vector<32x512xf32>
    %c0_5 = arith.constant 0 : index
    %c0_6 = arith.constant 0 : index
    %c0_7 = arith.constant 0 : index
    %6 = vector.load %arg3[%c0_5, %c0_6, %c0_7] : memref<5x32x1xf32, #tpu.memory_space<vmem>>, vector<1x32x1xf32>
    %7 = vector.shape_cast %6 : vector<1x32x1xf32> to vector<32x1xf32>
    %8 = vector.broadcast %7 : vector<32x1xf32> to vector<32x512xf32>
    %9 = arith.addf %5, %8 : vector<32x512xf32>
    %cst_8 = arith.constant 0.000000e+00 : f32
    %10 = vector.broadcast %cst_8 : f32 to vector<32x512xf32>
    %11 = arith.maximumf %9, %10 : vector<32x512xf32>
    %12 = arith.addf %2, %11 : vector<32x512xf32>
    %c1 = arith.constant 1 : index
    %c0_9 = arith.constant 0 : index
    %c0_10 = arith.constant 0 : index
    %13 = vector.load %arg2[%c1, %c0_9, %c0_10] : memref<5x32x32xf32, #tpu.memory_space<vmem>>, vector<1x32x32xf32>
    %14 = vector.shape_cast %13 : vector<1x32x32xf32> to vector<32x32xf32>
    %cst_11 = arith.constant dense<0.000000e+00> : vector<32x512xf32>
    %15 = tpu.matmul %14, %11, %cst_11 {dimension_numbers = #tpu.dot_dimension_numbers<[1], [0], [0], [1], [0, 0, 1, 1], [], []>} : vector<32x32xf32>, vector<32x512xf32>, vector<32x512xf32> -> vector<32x512xf32>
    %c1_12 = arith.constant 1 : index
    %c0_13 = arith.constant 0 : index
    %c0_14 = arith.constant 0 : index
    %16 = vector.load %arg3[%c1_12, %c0_13, %c0_14] : memref<5x32x1xf32, #tpu.memory_space<vmem>>, vector<1x32x1xf32>
    %17 = vector.shape_cast %16 : vector<1x32x1xf32> to vector<32x1xf32>
    %18 = vector.broadcast %17 : vector<32x1xf32> to vector<32x512xf32>
    %19 = arith.addf %15, %18 : vector<32x512xf32>
    %20 = arith.addf %19, %12 : vector<32x512xf32>
    %cst_15 = arith.constant 0.000000e+00 : f32
    %21 = vector.broadcast %cst_15 : f32 to vector<32x512xf32>
    %22 = arith.maximumf %20, %21 : vector<32x512xf32>
    %23 = arith.addf %12, %22 : vector<32x512xf32>
    %c2 = arith.constant 2 : index
    %c0_16 = arith.constant 0 : index
    %c0_17 = arith.constant 0 : index
    %24 = vector.load %arg2[%c2, %c0_16, %c0_17] : memref<5x32x32xf32, #tpu.memory_space<vmem>>, vector<1x32x32xf32>
    %25 = vector.shape_cast %24 : vector<1x32x32xf32> to vector<32x32xf32>
    %cst_18 = arith.constant dense<0.000000e+00> : vector<32x512xf32>
    %26 = tpu.matmul %25, %22, %cst_18 {dimension_numbers = #tpu.dot_dimension_numbers<[1], [0], [0], [1], [0, 0, 1, 1], [], []>} : vector<32x32xf32>, vector<32x512xf32>, vector<32x512xf32> -> vector<32x512xf32>
    %c2_19 = arith.constant 2 : index
    %c0_20 = arith.constant 0 : index
    %c0_21 = arith.constant 0 : index
    %27 = vector.load %arg3[%c2_19, %c0_20, %c0_21] : memref<5x32x1xf32, #tpu.memory_space<vmem>>, vector<1x32x1xf32>
    %28 = vector.shape_cast %27 : vector<1x32x1xf32> to vector<32x1xf32>
    %29 = vector.broadcast %28 : vector<32x1xf32> to vector<32x512xf32>
    %30 = arith.addf %26, %29 : vector<32x512xf32>
    %31 = arith.addf %30, %23 : vector<32x512xf32>
    %cst_22 = arith.constant 0.000000e+00 : f32
    %32 = vector.broadcast %cst_22 : f32 to vector<32x512xf32>
    %33 = arith.maximumf %31, %32 : vector<32x512xf32>
    %34 = arith.addf %23, %33 : vector<32x512xf32>
    %c3 = arith.constant 3 : index
    %c0_23 = arith.constant 0 : index
    %c0_24 = arith.constant 0 : index
    %35 = vector.load %arg2[%c3, %c0_23, %c0_24] : memref<5x32x32xf32, #tpu.memory_space<vmem>>, vector<1x32x32xf32>
    %36 = vector.shape_cast %35 : vector<1x32x32xf32> to vector<32x32xf32>
    %cst_25 = arith.constant dense<0.000000e+00> : vector<32x512xf32>
    %37 = tpu.matmul %36, %33, %cst_25 {dimension_numbers = #tpu.dot_dimension_numbers<[1], [0], [0], [1], [0, 0, 1, 1], [], []>} : vector<32x32xf32>, vector<32x512xf32>, vector<32x512xf32> -> vector<32x512xf32>
    %c3_26 = arith.constant 3 : index
    %c0_27 = arith.constant 0 : index
    %c0_28 = arith.constant 0 : index
    %38 = vector.load %arg3[%c3_26, %c0_27, %c0_28] : memref<5x32x1xf32, #tpu.memory_space<vmem>>, vector<1x32x1xf32>
    %39 = vector.shape_cast %38 : vector<1x32x1xf32> to vector<32x1xf32>
    %40 = vector.broadcast %39 : vector<32x1xf32> to vector<32x512xf32>
    %41 = arith.addf %37, %40 : vector<32x512xf32>
    %42 = arith.addf %41, %34 : vector<32x512xf32>
    %cst_29 = arith.constant 0.000000e+00 : f32
    %43 = vector.broadcast %cst_29 : f32 to vector<32x512xf32>
    %44 = arith.maximumf %42, %43 : vector<32x512xf32>
    %c4 = arith.constant 4 : index
    %c0_30 = arith.constant 0 : index
    %c0_31 = arith.constant 0 : index
    %45 = vector.load %arg2[%c4, %c0_30, %c0_31] : memref<5x32x32xf32, #tpu.memory_space<vmem>>, vector<1x32x32xf32>
    %46 = vector.shape_cast %45 : vector<1x32x32xf32> to vector<32x32xf32>
    %cst_32 = arith.constant dense<0.000000e+00> : vector<32x512xf32>
    %47 = tpu.matmul %46, %44, %cst_32 {dimension_numbers = #tpu.dot_dimension_numbers<[1], [0], [0], [1], [0, 0, 1, 1], [], []>} : vector<32x32xf32>, vector<32x512xf32>, vector<32x512xf32> -> vector<32x512xf32>
    %c4_33 = arith.constant 4 : index
    %c0_34 = arith.constant 0 : index
    %c0_35 = arith.constant 0 : index
    %48 = vector.load %arg3[%c4_33, %c0_34, %c0_35] : memref<5x32x1xf32, #tpu.memory_space<vmem>>, vector<1x32x1xf32>
    %49 = vector.shape_cast %48 : vector<1x32x1xf32> to vector<32x1xf32>
    %50 = vector.broadcast %49 : vector<32x1xf32> to vector<32x512xf32>
    %51 = arith.addf %47, %50 : vector<32x512xf32>
    %52 = vector.extract_strided_slice %51 {offsets = [0, 0], sizes = [8, 512], strides = [1, 1]} : vector<32x512xf32> to vector<8x512xf32>
    %c0_36 = arith.constant 0 : index
    %c0_37 = arith.constant 0 : index
    %53 = vector.load %arg4[%c0_36, %c0_37] : memref<8x512xf32, #tpu.memory_space<vmem>>, vector<8x512xf32>
    tpu.vector_store %arg4[%c0_36, %c0_37], %52 {strides = array<i32>} : memref<8x512xf32, #tpu.memory_space<vmem>>, vector<8x512xf32>,
    return
  }
  func.func @transform_0(%arg0: i32) -> (i32, i32) {
    %c0_i32 = arith.constant 0 : i32
    %c0_i32_0 = arith.constant 0 : i32
    return %c0_i32, %arg0 : i32, i32
  }
  func.func @transform_1(%arg0: i32) -> (i32, i32, i32) {
    %c0_i32 = arith.constant 0 : i32
    %c0_i32_0 = arith.constant 0 : i32
    %c0_i32_1 = arith.constant 0 : i32
    %c0_i32_2 = arith.constant 0 : i32
    return %c0_i32, %c0_i32_0, %c0_i32_1 : i32, i32, i32
  }
  func.func @transform_2(%arg0: i32) -> (i32, i32, i32) {
    %c0_i32 = arith.constant 0 : i32
    %c0_i32_0 = arith.constant 0 : i32
    %c0_i32_1 = arith.constant 0 : i32
    %c0_i32_2 = arith.constant 0 : i32
    return %c0_i32, %c0_i32_0, %c0_i32_1 : i32, i32, i32
  }
  func.func @transform_3(%arg0: i32) -> (i32, i32) {
    %c0_i32 = arith.constant 0 : i32
    %c0_i32_0 = arith.constant 0 : i32
    return %c0_i32, %arg0 : i32, i32
  }
}

</mosaic_0001>

<llo_original>
// kernel: fully_skip_forward.1
$region0: #{fully_skip_forward.1}
  #allocation0 [shape = 'u32[]', space=smem, size = 0x4, offset = 0x4, fixed_abs, tag = 'smem constant byte address 0x4 - core index']
  #allocation1 [shape = 'u32[144,128]{1,0:T(1,128)}', space=vmem, size = 0x12000, scoped, tag = 'internal scratch']
  %s0 = inlined_call_operand.hbm [shape: f32[16,1024], index: 0, kind: input, shape index: {}]
  %s1 = inlined_call_operand.vmem [shape: f32[5,32,32], index: 1, kind: input, shape index: {}]
  %s2 = inlined_call_operand.vmem [shape: f32[5,32,1], index: 2, kind: input, shape index: {}]
  %s3 = inlined_call_operand.hbm [shape: f32[8,1024], index: 3, kind: output, shape index: {}]
  %s4 = sld [smem:[#allocation0]]
  $region49: #{fully_skip_forward.1} parent=0
    _
  %s6 = ssub.s32 1, %s4
  %s7 = scalar_select 0, %s6, %s4
  $region1: #{fully_skip_forward.1} parent=0
    #allocation2 [shape = 'u8[65536]{0}', space=vmem, size = 0x10000, scoped, tag = 'input window, operand 0']
    #allocation3 [shape = 's32[2]{0}', space=sflag, size = 0x8, scoped, tag = 'scoped memory for fully_skip_forward.1']
    #allocation4 [shape = 's32[2]{0}', space=sflag, size = 0x8, scoped, tag = 'scoped memory for fully_skip_forward.1']
    #allocation5 [shape = 'u8[32768]{0}', space=vmem, size = 0x8000, scoped, tag = 'output window, operand 0']
    %8 = vsyncpa [#allocation3], 0
    %s9 = scalar_lea.sflag [#allocation3], 1
    %10 = vsyncpa %s9, 0
    %11 = vsyncpa [#allocation4], 0
    %s12 = scalar_lea.sflag [#allocation4], 1
    %13 = vsyncpa %s12, 0
    loop: start=0, step=1, limit=4
    $region2: #{fully_skip_forward.1} parent=1 // loop_pre_header
      _
    $region3: #{fully_skip_forward.1} parent=1 // loop_header
      %s15 = sphi 0, %s19
      %p16 = scmp.ge.s32.totalorder %s15, 4
      %s25 = sphi 0, %s27
      %s28 = sphi 0, %s25
      %s29 = sphi 0, %s28
      %s45 = sphi 0, %s29
      %s49 = sphi 0, %s49
      %s51 = sphi 0, %s49
      %s52 = sphi 0, %s51
      %s66 = sphi 0, %s52
      %s70 = sphi 0, %s70
      %s72 = sphi 0, %s70
      %s73 = sphi 0, %s72
      %s87 = sphi 0, %s73
      %s93 = sphi 0, %s95
      %s96 = sphi 0, %s93
      %s97 = sphi 0, %s96
      %s113 = sphi 0, %s97
    $region4: #{fully_skip_forward.1} parent=1 // loop_header_branch
      %18 = sbr.rel (%p16) target = $region8
    $region5: #{fully_skip_forward.1} parent=1 // loop_body
      %s20 = ssub.s32 %s15, 1
      %s21 = ssub.s32 %s15, 2
      %s22 = sadd.s32 %s15, 1
      %s23 = ssub.s32 %s15, %s22
      %p24 = scmp.eq.s32.totalorder %s23, 0
      %s26 = sadd.s32 %s25, 1
      %s27 = scalar_select %p24, %s25, %s26
      %p30 = pneg %p24
      %p31 = scmp.eq.s32.totalorder %s15, 1
      %p32 = por %p30, %p31
      %p33 = scmp.ne.s32.totalorder %s25, %s28
      %p34 = scmp.eq.s32.totalorder %s15, 0
      %p35 = por %p33, %p34
      %p36 = scmp.ne.s32.totalorder %s25, %s28
      %p37 = scmp.eq.s32.totalorder %s20, 1
      %p38 = por %p36, %p37
      %p39 = scmp.ne.s32.totalorder %s28, %s29
      %p40 = scmp.eq.s32.totalorder %s20, 0
      %p41 = por %p39, %p40
      %p42 = scmp.ne.s32.totalorder %s28, %s29
      %p43 = scmp.eq.s32.totalorder %s21, 1
      %p44 = por %p42, %p43
      %p46 = scmp.ne.s32.totalorder %s29, %s45
      %p47 = scmp.eq.s32.totalorder %s21, 0
      %p48 = por %p46, %p47
      %s50 = sadd.s32 %s49, 1
      %p53 = scmp.eq.s32.totalorder %s15, 1
      %p54 = scmp.ne.s32.totalorder %s49, %s51
      %p55 = scmp.eq.s32.totalorder %s15, 0
      %p56 = por %p54, %p55
      %p57 = scmp.ne.s32.totalorder %s49, %s51
      %p58 = scmp.eq.s32.totalorder %s20, 1
      %p59 = por %p57, %p58
      %p60 = scmp.ne.s32.totalorder %s51, %s52
      %p61 = scmp.eq.s32.totalorder %s20, 0
      %p62 = por %p60, %p61
      %p63 = scmp.ne.s32.totalorder %s51, %s52
      %p64 = scmp.eq.s32.totalorder %s21, 1
      %p65 = por %p63, %p64
      %p67 = scmp.ne.s32.totalorder %s52, %s66
      %p68 = scmp.eq.s32.totalorder %s21, 0
      %p69 = por %p67, %p68
      %s71 = sadd.s32 %s70, 1
      %p74 = scmp.eq.s32.totalorder %s15, 1
      %p75 = scmp.ne.s32.totalorder %s70, %s72
      %p76 = scmp.eq.s32.totalorder %s15, 0
      %p77 = por %p75, %p76
      %p78 = scmp.ne.s32.totalorder %s70, %s72
      %p79 = scmp.eq.s32.totalorder %s20, 1
      %p80 = por %p78, %p79
      %p81 = scmp.ne.s32.totalorder %s72, %s73
      %p82 = scmp.eq.s32.totalorder %s20, 0
      %p83 = por %p81, %p82
      %p84 = scmp.ne.s32.totalorder %s72, %s73
      %p85 = scmp.eq.s32.totalorder %s21, 1
      %p86 = por %p84, %p85
      %p88 = scmp.ne.s32.totalorder %s73, %s87
      %p89 = scmp.eq.s32.totalorder %s21, 0
      %p90 = por %p88, %p89
      %s91 = ssub.s32 %s15, %s22
      %p92 = scmp.eq.s32.totalorder %s91, 0
      %s94 = sadd.s32 %s93, 1
      %s95 = scalar_select %p92, %s93, %s94
      %p98 = pneg %p92
      %p99 = scmp.eq.s32.totalorder %s15, 1
      %p100 = por %p98, %p99
      %p101 = scmp.ne.s32.totalorder %s93, %s96
      %p102 = scmp.eq.s32.totalorder %s15, 0
      %p103 = por %p101, %p102
      %p104 = scmp.ne.s32.totalorder %s93, %s96
      %p105 = scmp.eq.s32.totalorder %s20, 1
      %p106 = por %p104, %p105
      %p107 = scmp.ne.s32.totalorder %s96, %s97
      %p108 = scmp.eq.s32.totalorder %s20, 0
      %p109 = por %p107, %p108
      %p110 = scmp.ne.s32.totalorder %s96, %s97
      %p111 = scmp.eq.s32.totalorder %s21, 1
      %p112 = por %p110, %p111
      %p114 = scmp.ne.s32.totalorder %s97, %s113
      %p115 = scmp.eq.s32.totalorder %s21, 0
      %p116 = por %p114, %p115
      %p117 = scmp.le.s32.totalorder 1, %s15
      %p118 = scmp.lt.s32.totalorder %s15, 3
      %p119 = pnand %p117, %p118
      %p120 = pneg %p119
      // Predicated region
      $region9: #{fully_skip_forward.1} parent=5 // pred_check
        _
      $region10: #{fully_skip_forward.1} parent=5 // pred_check_branch
        %122 = sbr.rel (%p119) target = $region12
      $region11: #{fully_skip_forward.1} parent=5 // pred_region
        %s123 = ssub.s32 %s15, 1
        // Predicated region
        $region13: #{fully_skip_forward.1} parent=11 // pred_check
          %p124 = pneg %p62
        $region14: #{fully_skip_forward.1} parent=11 // pred_check_branch
          %126 = sbr.rel (%p124) target = $region16
        $region15: #{fully_skip_forward.1} parent=11 // pred_region
          _
        $region16: #{fully_skip_forward.1} parent=11 // pred_fallthru
          _
        // Predicated region
        $region17: #{fully_skip_forward.1} parent=11 // pred_check
          %p127 = pneg %p83
        $region18: #{fully_skip_forward.1} parent=11 // pred_check_branch
          %129 = sbr.rel (%p127) target = $region20
        $region19: #{fully_skip_forward.1} parent=11 // pred_region
          _
        $region20: #{fully_skip_forward.1} parent=11 // pred_fallthru
          _
      $region12: #{fully_skip_forward.1} parent=5 // pred_fallthru
        _
      %p130 = scmp.lt.s32.totalorder %s15, 2
      // Predicated region
      $region21: #{fully_skip_forward.1} parent=5 // pred_check
        %p131 = pneg %p130
      $region22: #{fully_skip_forward.1} parent=5 // pred_check_branch
        %133 = sbr.rel (%p131) target = $region24
      $region23: #{fully_skip_forward.1} parent=5 // pred_region
        // Predicated region
        $region25: #{fully_skip_forward.1} parent=23 // pred_check
          %p134 = pneg %p35
        $region26: #{fully_skip_forward.1} parent=23 // pred_check_branch
          %136 = sbr.rel (%p134) target = $region28
        $region27: #{fully_skip_forward.1} parent=23 // pred_region
          %s137 = sand.u32 %s25, 1
          %s138 = scalar_lea.sflag [#allocation3], %s137
          %s139 = sand.u32 %s25, 1
          %s140 = smul.addr %s139, 64
          %s141 = scalar_lea.vmem [#allocation2], %s140
          %s142 = smul.u32 4, %s15
          %s144 = ssub.s32 1024, 1024
          %145 = vsyncadd %s138, %s144
          %s146 = smul.addr %s142, 128
          %s147 = scalar_lea.hbm %s0, %s146
          %s148 = sshll.u32 %s141, 4
          %s149 = int_to_ptr.vmem [resolvable:$true] %s148
          %154 = dma.hbm_to_vmem [thread:$0]  %s147, 1024, %s149, %s138, 1024, 512, 32
        $region28: #{fully_skip_forward.1} parent=23 // pred_fallthru
          _
      $region24: #{fully_skip_forward.1} parent=5 // pred_fallthru
        _
      %p155 = scmp.le.s32.totalorder 1, %s15
      %p156 = scmp.lt.s32.totalorder %s15, 3
      %p157 = pnand %p155, %p156
      %p158 = pneg %p157
      // Predicated region
      $region29: #{fully_skip_forward.1} parent=5 // pred_check
        _
      $region30: #{fully_skip_forward.1} parent=5 // pred_check_branch
        %160 = sbr.rel (%p157) target = $region32
      $region31: #{fully_skip_forward.1} parent=5 // pred_region
        %s161 = ssub.s32 %s15, 1
        %s162 = sand.u32 %s28, 1
        %s163 = scalar_lea.sflag [#allocation3], %s162
        %s164 = sand.u32 %s28, 1
        %s165 = smul.addr %s164, 64
        %s166 = scalar_lea.vmem [#allocation2], %s165
        // Predicated region
        $region33: #{fully_skip_forward.1} parent=31 // pred_check
          %p167 = pneg %p41
        $region34: #{fully_skip_forward.1} parent=31 // pred_check_branch
          %169 = sbr.rel (%p167) target = $region36
        $region35: #{fully_skip_forward.1} parent=31 // pred_region
          %170 = dma.done %s163, 1024
        $region36: #{fully_skip_forward.1} parent=31 // pred_fallthru
          _
        %s171 = sand.u32 %s28, 1
        %s172 = scalar_lea.sflag [#allocation3], %s171
        %s173 = sand.u32 %s28, 1
        %s174 = smul.addr %s173, 64
        %s175 = scalar_lea.vmem [#allocation2], %s174
        %p176 = pneg %p41
        %p177 = pneg %p38
        %p178 = pneg %p62
        %p179 = pneg %p59
        %p180 = pneg %p83
        %p181 = pneg %p80
        %p182 = pneg %p109
        %p183 = pneg %p106
        %s184 = sand.u32 %s96, 1
        %s185 = scalar_lea.sflag [#allocation4], %s184
        %s186 = sand.u32 %s96, 1
        %s187 = smul.addr %s186, 32
        %s188 = scalar_lea.vmem [#allocation5], %s187
        %s189 = smul.u32 4, %s20
        %s190 = smul.u32 4, %s20
        %v191 = vld [vmem:[%s166] sm:$0xff]
        %v192 = vld [vmem:[%s166 + $0x8] sm:$0xff]
        %v193 = vld [vmem:[%s166 + $0x10] sm:$0xff]
        %v194 = vld [vmem:[%s166 + $0x18] sm:$0xff]
        %v195 = vld [vmem:[%s166 + $0x20] sm:$0xff]
        %v196 = vld [vmem:[%s166 + $0x28] sm:$0xff]
        %v197 = vld [vmem:[%s166 + $0x30] sm:$0xff]
        %v198 = vld [vmem:[%s166 + $0x38] sm:$0xff]
        %v199 = vld [vmem:[%s1] sm:$0xff]
        %v200 = vld [vmem:[%s1 + $0x8] sm:$0xff]
        %v201 = vld [vmem:[%s1 + $0x10] sm:$0xff]
        %v202 = vld [vmem:[%s1 + $0x18] sm:$0xff]
        %v203 = vld [vmem:[%s2] sm:$0xff]
        %v204 = vld [vmem:[%s2 + $0x8] sm:$0xff]
        %v205 = vld [vmem:[%s2 + $0x10] sm:$0xff]
        %v206 = vld [vmem:[%s2 + $0x18] sm:$0xff]
        %208 = vset.pattern.permute.xlu0 0
        %209 = vperm.xlu0 %208, %v203
        %v210 = vpop.permute.xlu0 %209
        %213 = vset.pattern.permute.xlu0 0
        %214 = vperm.xlu0 %213, %v204
        %v215 = vpop.permute.xlu0 %214
        %218 = vset.pattern.permute.xlu0 0
        %219 = vperm.xlu0 %218, %v205
        %v220 = vpop.permute.xlu0 %219
        %223 = vset.pattern.permute.xlu0 0
        %224 = vperm.xlu0 %223, %v206
        %v225 = vpop.permute.xlu0 %224
        %vm227 = vcmask 261120
        %v229 = vsel %vm227, %v199, 0
        %v232 = vsel %vm227, %v200, 0
        %v235 = vsel %vm227, %v201, 0
        %v238 = vsel %vm227, %v202, 0
        %240 = vmatprep.subr.mxu0 %v192
        %241 = vmatpush1.msra.mxu0 %v191
        %242 = vmatprep.subr.mxu0 %v196
        %243 = vmatpush1.msra.mxu0 %v195
        %244 = vmatprep.subr.mxu0 0.0
        %245 = vmatpush1.msra.mxu0 0.0
        %246 = vmatprep.subr.mxu0 0.0
        %247 = vmatpush1.msra.mxu0 0.0
        %248 = vmatprep.subr.mxu0 0.0
        %249 = vmatpush1.msra.mxu0 0.0
        %250 = vmatprep.subr.mxu0 0.0
        %251 = vmatpush1.msra.mxu0 0.0
        %252 = vmatprep.subr.mxu0 0.0
        %253 = vmatpush1.msra.mxu0 0.0
        %254 = vmatprep.subr.mxu0 0.0
        %255 = vmatpush1.msra.mxu0 0.0
        %256 = vmatprep.subr.mxu0 0.0
        %257 = vmatpush1.msra.mxu0 0.0
        %258 = vmatprep.subr.mxu0 0.0
        %259 = vmatpush1.msra.mxu0 0.0
        %260 = vmatprep.subr.mxu0 0.0
        %261 = vmatpush1.msra.mxu0 0.0
        %262 = vmatprep.subr.mxu0 0.0
        %263 = vmatpush1.msra.mxu0 0.0
        %264 = vmatprep.subr.mxu0 0.0
        %265 = vmatpush1.msra.mxu0 0.0
        %266 = vmatprep.subr.mxu0 0.0
        %267 = vmatpush1.msra.mxu0 0.0
        %268 = vmatprep.subr.mxu0 0.0
        %269 = vmatpush1.msra.mxu0 0.0
        %270 = vmatprep.subr.mxu0 0.0
        %271 = vmatpush1.msra.mxu0 0.0
        %272 = vmatprep.subr.mxu0 0.0
        %273 = vmatpush1.msra.mxu0 0.0
        %274 = vmatprep.subr.mxu0 0.0
        %275 = vmatpush1.msra.mxu0 0.0
        %276 = vmatprep.subr.mxu0 0.0
        %277 = vmatpush1.msra.mxu0 0.0
        %278 = vmatprep.subr.mxu0 0.0
        %279 = vmatpush1.msra.mxu0 0.0
        %280 = vmatprep.subr.mxu0 0.0
        %281 = vmatpush1.msra.mxu0 0.0
        %282 = vmatprep.subr.mxu0 0.0
        %283 = vmatpush1.msra.mxu0 0.0
        %284 = vmatprep.subr.mxu0 0.0
        %285 = vmatpush1.msra.mxu0 0.0
        %286 = vmatprep.subr.mxu0 0.0
        %287 = vmatpush1.msra.mxu0 0.0
        %288 = vmatprep.subr.mxu0 0.0
        %289 = vmatpush1.msra.mxu0 0.0
        %290 = vmatprep.subr.mxu0 0.0
        %291 = vmatpush1.msra.mxu0 0.0
        %292 = vmatprep.subr.mxu0 0.0
        %293 = vmatpush1.msra.mxu0 0.0
        %294 = vmatprep.subr.mxu0 0.0
        %295 = vmatpush1.msra.mxu0 0.0
        %296 = vmatprep.subr.mxu0 0.0
        %297 = vmatpush1.msra.mxu0 0.0
        %298 = vmatprep.subr.mxu0 0.0
        %299 = vmatpush1.msra.mxu0 0.0
        %300 = vmatprep.subr.mxu0 0.0
        %301 = vmatpush1.msra.mxu0 0.0
        %302 = vmatprep.subr.mxu0 0.0
        %303 = vmatpush1.msra.mxu0 0.0
        %304 = vmatprep.mubr.f32.mxu0 0.0
        %305 = vmatmul.mubr.f32.gmra.mrb[0].mxu0 %v229
        %v306 = vpop.f32.mrb[0].mxu0
        %v307 = vadd.f32 %v210, %v306
        %v308 = vpop.f32.mrb[0].mxu0
        %v309 = vadd.f32 %v210, %v308
        %310 = vmatprep.mubr.f32.mxu0 0.0
        %311 = vmatmul.mubr.f32.gmra.mrb[0].mxu0 %v232
        %v312 = vpop.f32.mrb[0].mxu0
        %v313 = vadd.f32 %v215, %v312
        %v314 = vpop.f32.mrb[0].mxu0
        %v315 = vadd.f32 %v215, %v314
        %316 = vmatprep.mubr.f32.mxu0 0.0
        %317 = vmatmul.mubr.f32.gmra.mrb[0].mxu0 %v235
        %v318 = vpop.f32.mrb[0].mxu0
        %v319 = vadd.f32 %v220, %v318
        %v320 = vpop.f32.mrb[0].mxu0
        %v321 = vadd.f32 %v220, %v320
        %322 = vmatprep.mubr.f32.mxu0 0.0
        %323 = vmatmul.mubr.f32.gmra.mrb[0].mxu0 %v238
        %v324 = vpop.f32.mrb[0].mxu0
        %v325 = vadd.f32 %v225, %v324
        %v326 = vpop.f32.mrb[0].mxu0
        %v327 = vadd.f32 %v225, %v326
        %328 = vdwg.mxu0
        %329 = vmatprep.subr.mxu0 %v194
        %330 = vmatpush1.msra.mxu0 %v193
        %331 = vmatprep.subr.mxu0 %v198
        %332 = vmatpush1.msra.mxu0 %v197
        %333 = vmatprep.subr.mxu0 0.0
        %334 = vmatpush1.msra.mxu0 0.0
        %335 = vmatprep.subr.mxu0 0.0
        %336 = vmatpush1.msra.mxu0 0.0
        %337 = vmatprep.subr.mxu0 0.0
        %338 = vmatpush1.msra.mxu0 0.0
        %339 = vmatprep.subr.mxu0 0.0
        %340 = vmatpush1.msra.mxu0 0.0
        %341 = vmatprep.subr.mxu0 0.0
        %342 = vmatpush1.msra.mxu0 0.0
        %343 = vmatprep.subr.mxu0 0.0
        %344 = vmatpush1.msra.mxu0 0.0
        %345 = vmatprep.subr.mxu0 0.0
        %346 = vmatpush1.msra.mxu0 0.0
        %347 = vmatprep.subr.mxu0 0.0
        %348 = vmatpush1.msra.mxu0 0.0
        %349 = vmatprep.subr.mxu0 0.0
        %350 = vmatpush1.msra.mxu0 0.0
        %351 = vmatprep.subr.mxu0 0.0
        %352 = vmatpush1.msra.mxu0 0.0
        %353 = vmatprep.subr.mxu0 0.0
        %354 = vmatpush1.msra.mxu0 0.0
        %355 = vmatprep.subr.mxu0 0.0
        %356 = vmatpush1.msra.mxu0 0.0
        %357 = vmatprep.subr.mxu0 0.0
        %358 = vmatpush1.msra.mxu0 0.0
        %359 = vmatprep.subr.mxu0 0.0
        %360 = vmatpush1.msra.mxu0 0.0
        %361 = vmatprep.subr.mxu0 0.0
        %362 = vmatpush1.msra.mxu0 0.0
        %363 = vmatprep.subr.mxu0 0.0
        %364 = vmatpush1.msra.mxu0 0.0
        %365 = vmatprep.subr.mxu0 0.0
        %366 = vmatpush1.msra.mxu0 0.0
        %367 = vmatprep.subr.mxu0 0.0
        %368 = vmatpush1.msra.mxu0 0.0
        %369 = vmatprep.subr.mxu0 0.0
        %370 = vmatpush1.msra.mxu0 0.0
        %371 = vmatprep.subr.mxu0 0.0
        %372 = vmatpush1.msra.mxu0 0.0
        %373 = vmatprep.subr.mxu0 0.0
        %374 = vmatpush1.msra.mxu0 0.0
        %375 = vmatprep.subr.mxu0 0.0
        %376 = vmatpush1.msra.mxu0 0.0
        %377 = vmatprep.subr.mxu0 0.0
        %378 = vmatpush1.msra.mxu0 0.0
        %379 = vmatprep.subr.mxu0 0.0
        %380 = vmatpush1.msra.mxu0 0.0
        %381 = vmatprep.subr.mxu0 0.0
        %382 = vmatpush1.msra.mxu0 0.0
        %383 = vmatprep.subr.mxu0 0.0
        %384 = vmatpush1.msra.mxu0 0.0
        %385 = vmatprep.subr.mxu0 0.0
        %386 = vmatpush1.msra.mxu0 0.0
        %387 = vmatprep.subr.mxu0 0.0
        %388 = vmatpush1.msra.mxu0 0.0
        %389 = vmatprep.subr.mxu0 0.0
        %390 = vmatpush1.msra.mxu0 0.0
        %391 = vmatprep.subr.mxu0 0.0
        %392 = vmatpush1.msra.mxu0 0.0
        %393 = vmatprep.mubr.f32.mxu0 0.0
        %394 = vmatmul.mubr.f32.gmra.mrb[0].mxu0 %v229
        %v395 = vpop.f32.mrb[0].mxu0
        %v396 = vadd.f32 %v210, %v395
        %v397 = vpop.f32.mrb[0].mxu0
        %v398 = vadd.f32 %v210, %v397
        %399 = vmatprep.mubr.f32.mxu0 0.0
        %400 = vmatmul.mubr.f32.gmra.mrb[0].mxu0 %v232
        %v401 = vpop.f32.mrb[0].mxu0
        %v402 = vadd.f32 %v215, %v401
        %v403 = vpop.f32.mrb[0].mxu0
        %v404 = vadd.f32 %v215, %v403
        %405 = vmatprep.mubr.f32.mxu0 0.0
        %406 = vmatmul.mubr.f32.gmra.mrb[0].mxu0 %v235
        %v407 = vpop.f32.mrb[0].mxu0
        %v408 = vadd.f32 %v220, %v407
        %v409 = vpop.f32.mrb[0].mxu0
        %v410 = vadd.f32 %v220, %v409
        %411 = vmatprep.mubr.f32.mxu0 0.0
        %412 = vmatmul.mubr.f32.gmra.mrb[0].mxu0 %v238
        %v413 = vpop.f32.mrb[0].mxu0
        %v414 = vadd.f32 %v225, %v413
        %v415 = vpop.f32.mrb[0].mxu0
        %v416 = vadd.f32 %v225, %v415
        %417 = vdwg.mxu0
        %v418 = vmax.f32 %v307, 0.0
        %v419 = vmax.f32 %v309, 0.0
        %v420 = vmax.f32 %v396, 0.0
        %v421 = vmax.f32 %v398, 0.0
        %v422 = vmax.f32 %v313, 0.0
        %v423 = vmax.f32 %v315, 0.0
        %v424 = vmax.f32 %v402, 0.0
        %v425 = vmax.f32 %v404, 0.0
        %v426 = vmax.f32 %v319, 0.0
        %v427 = vmax.f32 %v321, 0.0
        %v428 = vmax.f32 %v408, 0.0
        %v429 = vmax.f32 %v410, 0.0
        %v430 = vmax.f32 %v325, 0.0
        %v431 = vmax.f32 %v327, 0.0
        %v432 = vmax.f32 %v414, 0.0
        %v433 = vmax.f32 %v416, 0.0
        %v434 = vadd.f32 %v191, %v418
        %v435 = vadd.f32 %v192, %v419
        %v436 = vadd.f32 %v193, %v420
        %v437 = vadd.f32 %v194, %v421
        %v438 = vadd.f32 %v195, %v422
        %v439 = vadd.f32 %v196, %v423
        %v440 = vadd.f32 %v197, %v424
        %v441 = vadd.f32 %v198, %v425
        %v442 = vadd.f32 %v426, 0.0
        %v443 = vadd.f32 %v427, 0.0
        %v444 = vadd.f32 %v428, 0.0
        %v445 = vadd.f32 %v429, 0.0
        %v446 = vadd.f32 %v430, 0.0
        %v447 = vadd.f32 %v431, 0.0
        %v448 = vadd.f32 %v432, 0.0
        %v449 = vadd.f32 %v433, 0.0
        %s450 = scalar_lea.vmem %s1, 32
        %v451 = vld [vmem:[%s450] sm:$0xff]
        %v452 = vld [vmem:[%s450 + $0x8] sm:$0xff]
        %v453 = vld [vmem:[%s450 + $0x10] sm:$0xff]
        %v454 = vld [vmem:[%s450 + $0x18] sm:$0xff]
        %s455 = scalar_lea.vmem %s2, 32
        %v456 = vld [vmem:[%s455] sm:$0xff]
        %v457 = vld [vmem:[%s455 + $0x8] sm:$0xff]
        %v458 = vld [vmem:[%s455 + $0x10] sm:$0xff]
        %v459 = vld [vmem:[%s455 + $0x18] sm:$0xff]
        %461 = vset.pattern.permute.xlu0 0
        %462 = vperm.xlu0 %461, %v456
        %v463 = vpop.permute.xlu0 %462
        %466 = vset.pattern.permute.xlu0 0
        %467 = vperm.xlu0 %466, %v457
        %v468 = vpop.permute.xlu0 %467
        %471 = vset.pattern.permute.xlu0 0
        %472 = vperm.xlu0 %471, %v458
        %v473 = vpop.permute.xlu0 %472
        %476 = vset.pattern.permute.xlu0 0
        %477 = vperm.xlu0 %476, %v459
        %v478 = vpop.permute.xlu0 %477
        %v481 = vsel %vm227, %v451, 0
        %v484 = vsel %vm227, %v452, 0
        %v487 = vsel %vm227, %v453, 0
        %v490 = vsel %vm227, %v454, 0
        %492 = vmatprep.subr.mxu0 %v419
        %493 = vmatpush1.msra.mxu0 %v418
        %494 = vmatprep.subr.mxu0 %v423
        %495 = vmatpush1.msra.mxu0 %v422
        %496 = vmatprep.subr.mxu0 %v427
        %497 = vmatpush1.msra.mxu0 %v426
        %498 = vmatprep.subr.mxu0 %v431
        %499 = vmatpush1.msra.mxu0 %v430
        %500 = vmatprep.subr.mxu0 0.0
        %501 = vmatpush1.msra.mxu0 0.0
        %502 = vmatprep.subr.mxu0 0.0
        %503 = vmatpush1.msra.mxu0 0.0
        %504 = vmatprep.subr.mxu0 0.0
        %505 = vmatpush1.msra.mxu0 0.0
        %506 = vmatprep.subr.mxu0 0.0
        %507 = vmatpush1.msra.mxu0 0.0
        %508 = vmatprep.subr.mxu0 0.0
        %509 = vmatpush1.msra.mxu0 0.0
        %510 = vmatprep.subr.mxu0 0.0
        %511 = vmatpush1.msra.mxu0 0.0
        %512 = vmatprep.subr.mxu0 0.0
        %513 = vmatpush1.msra.mxu0 0.0
        %514 = vmatprep.subr.mxu0 0.0
        %515 = vmatpush1.msra.mxu0 0.0
        %516 = vmatprep.subr.mxu0 0.0
        %517 = vmatpush1.msra.mxu0 0.0
        %518 = vmatprep.subr.mxu0 0.0
        %519 = vmatpush1.msra.mxu0 0.0
        %520 = vmatprep.subr.mxu0 0.0
        %521 = vmatpush1.msra.mxu0 0.0
        %522 = vmatprep.subr.mxu0 0.0
        %523 = vmatpush1.msra.mxu0 0.0
        %524 = vmatprep.subr.mxu0 0.0
        %525 = vmatpush1.msra.mxu0 0.0
        %526 = vmatprep.subr.mxu0 0.0
        %527 = vmatpush1.msra.mxu0 0.0
        %528 = vmatprep.subr.mxu0 0.0
        %529 = vmatpush1.msra.mxu0 0.0
        %530 = vmatprep.subr.mxu0 0.0
        %531 = vmatpush1.msra.mxu0 0.0
        %532 = vmatprep.subr.mxu0 0.0
        %533 = vmatpush1.msra.mxu0 0.0
        %534 = vmatprep.subr.mxu0 0.0
        %535 = vmatpush1.msra.mxu0 0.0
        %536 = vmatprep.subr.mxu0 0.0
        %537 = vmatpush1.msra.mxu0 0.0
        %538 = vmatprep.subr.mxu0 0.0
        %539 = vmatpush1.msra.mxu0 0.0
        %540 = vmatprep.subr.mxu0 0.0
        %541 = vmatpush1.msra.mxu0 0.0
        %542 = vmatprep.subr.mxu0 0.0
        %543 = vmatpush1.msra.mxu0 0.0
        %544 = vmatprep.subr.mxu0 0.0
        %545 = vmatpush1.msra.mxu0 0.0
        %546 = vmatprep.subr.mxu0 0.0
        %547 = vmatpush1.msra.mxu0 0.0
        %548 = vmatprep.subr.mxu0 0.0
        %549 = vmatpush1.msra.mxu0 0.0
        %550 = vmatprep.subr.mxu0 0.0
        %551 = vmatpush1.msra.mxu0 0.0
        %552 = vmatprep.subr.mxu0 0.0
        %553 = vmatpush1.msra.mxu0 0.0
        %554 = vmatprep.subr.mxu0 0.0
        %555 = vmatpush1.msra.mxu0 0.0
        %556 = vmatprep.mubr.f32.mxu0 0.0
        %557 = vmatmul.mubr.f32.gmra.mrb[0].mxu0 %v481
        %v558 = vpop.f32.mrb[0].mxu0
        %v559 = vadd.f32 %v463, %v558
        %v560 = vpop.f32.mrb[0].mxu0
        %v561 = vadd.f32 %v463, %v560
        %562 = vmatprep.mubr.f32.mxu0 0.0
        %563 = vmatmul.mubr.f32.gmra.mrb[0].mxu0 %v484
        %v564 = vpop.f32.mrb[0].mxu0
        %v565 = vadd.f32 %v468, %v564
        %v566 = vpop.f32.mrb[0].mxu0
        %v567 = vadd.f32 %v468, %v566
        %568 = vmatprep.mubr.f32.mxu0 0.0
        %569 = vmatmul.mubr.f32.gmra.mrb[0].mxu0 %v487
        %v570 = vpop.f32.mrb[0].mxu0
        %v571 = vadd.f32 %v473, %v570
        %v572 = vpop.f32.mrb[0].mxu0
        %v573 = vadd.f32 %v473, %v572
        %574 = vmatprep.mubr.f32.mxu0 0.0
        %575 = vmatmul.mubr.f32.gmra.mrb[0].mxu0 %v490
        %v576 = vpop.f32.mrb[0].mxu0
        %v577 = vadd.f32 %v478, %v576
        %v578 = vpop.f32.mrb[0].mxu0
        %v579 = vadd.f32 %v478, %v578
        %580 = vdwg.mxu0
        %581 = vmatprep.subr.mxu0 %v421
        %582 = vmatpush1.msra.mxu0 %v420
        %583 = vmatprep.subr.mxu0 %v425
        %584 = vmatpush1.msra.mxu0 %v424
        %585 = vmatprep.subr.mxu0 %v429
        %586 = vmatpush1.msra.mxu0 %v428
        %587 = vmatprep.subr.mxu0 %v433
        %588 = vmatpush1.msra.mxu0 %v432
        %589 = vmatprep.subr.mxu0 0.0
        %590 = vmatpush1.msra.mxu0 0.0
        %591 = vmatprep.subr.mxu0 0.0
        %592 = vmatpush1.msra.mxu0 0.0
        %593 = vmatprep.subr.mxu0 0.0
        %594 = vmatpush1.msra.mxu0 0.0
        %595 = vmatprep.subr.mxu0 0.0
        %596 = vmatpush1.msra.mxu0 0.0
        %597 = vmatprep.subr.mxu0 0.0
        %598 = vmatpush1.msra.mxu0 0.0
        %599 = vmatprep.subr.mxu0 0.0
        %600 = vmatpush1.msra.mxu0 0.0
        %601 = vmatprep.subr.mxu0 0.0
        %602 = vmatpush1.msra.mxu0 0.0
        %603 = vmatprep.subr.mxu0 0.0
        %604 = vmatpush1.msra.mxu0 0.0
        %605 = vmatprep.subr.mxu0 0.0
        %606 = vmatpush1.msra.mxu0 0.0
        %607 = vmatprep.subr.mxu0 0.0
        %608 = vmatpush1.msra.mxu0 0.0
        %609 = vmatprep.subr.mxu0 0.0
        %610 = vmatpush1.msra.mxu0 0.0
        %611 = vmatprep.subr.mxu0 0.0
        %612 = vmatpush1.msra.mxu0 0.0
        %613 = vmatprep.subr.mxu0 0.0
        %614 = vmatpush1.msra.mxu0 0.0
        %615 = vmatprep.subr.mxu0 0.0
        %616 = vmatpush1.msra.mxu0 0.0
        %617 = vmatprep.subr.mxu0 0.0
        %618 = vmatpush1.msra.mxu0 0.0
        %619 = vmatprep.subr.mxu0 0.0
        %620 = vmatpush1.msra.mxu0 0.0
        %621 = vmatprep.subr.mxu0 0.0
        %622 = vmatpush1.msra.mxu0 0.0
        %623 = vmatprep.subr.mxu0 0.0
        %624 = vmatpush1.msra.mxu0 0.0
        %625 = vmatprep.subr.mxu0 0.0
        %626 = vmatpush1.msra.mxu0 0.0
        %627 = vmatprep.subr.mxu0 0.0
        %628 = vmatpush1.msra.mxu0 0.0
        %629 = vmatprep.subr.mxu0 0.0
        %630 = vmatpush1.msra.mxu0 0.0
        %631 = vmatprep.subr.mxu0 0.0
        %632 = vmatpush1.msra.mxu0 0.0
        %633 = vmatprep.subr.mxu0 0.0
        %634 = vmatpush1.msra.mxu0 0.0
        %635 = vmatprep.subr.mxu0 0.0
        %636 = vmatpush1.msra.mxu0 0.0
        %637 = vmatprep.subr.mxu0 0.0
        %638 = vmatpush1.msra.mxu0 0.0
        %639 = vmatprep.subr.mxu0 0.0
        %640 = vmatpush1.msra.mxu0 0.0
        %641 = vmatprep.subr.mxu0 0.0
        %642 = vmatpush1.msra.mxu0 0.0
        %643 = vmatprep.subr.mxu0 0.0
        %644 = vmatpush1.msra.mxu0 0.0
        %645 = vmatprep.mubr.f32.mxu0 0.0
        %646 = vmatmul.mubr.f32.gmra.mrb[0].mxu0 %v481
        %v647 = vpop.f32.mrb[0].mxu0
        %v648 = vadd.f32 %v463, %v647
        %v649 = vpop.f32.mrb[0].mxu0
        %v650 = vadd.f32 %v463, %v649
        %651 = vmatprep.mubr.f32.mxu0 0.0
        %652 = vmatmul.mubr.f32.gmra.mrb[0].mxu0 %v484
        %v653 = vpop.f32.mrb[0].mxu0
        %v654 = vadd.f32 %v468, %v653
        %v655 = vpop.f32.mrb[0].mxu0
        %v656 = vadd.f32 %v468, %v655
        %657 = vmatprep.mubr.f32.mxu0 0.0
        %658 = vmatmul.mubr.f32.gmra.mrb[0].mxu0 %v487
        %v659 = vpop.f32.mrb[0].mxu0
        %v660 = vadd.f32 %v473, %v659
        %v661 = vpop.f32.mrb[0].mxu0
        %v662 = vadd.f32 %v473, %v661
        %663 = vmatprep.mubr.f32.mxu0 0.0
        %664 = vmatmul.mubr.f32.gmra.mrb[0].mxu0 %v490
        %v665 = vpop.f32.mrb[0].mxu0
        %v666 = vadd.f32 %v478, %v665
        %v667 = vpop.f32.mrb[0].mxu0
        %v668 = vadd.f32 %v478, %v667
        %669 = vdwg.mxu0
        %v670 = vadd.f32 %v559, %v434
        %v671 = vadd.f32 %v561, %v435
        %v672 = vadd.f32 %v648, %v436
        %v673 = vadd.f32 %v650, %v437
        %v674 = vadd.f32 %v565, %v438
        %v675 = vadd.f32 %v567, %v439
        %v676 = vadd.f32 %v654, %v440
        %v677 = vadd.f32 %v656, %v441
        %v678 = vadd.f32 %v571, %v442
        %v679 = vadd.f32 %v573, %v443
        %v680 = vadd.f32 %v660, %v444
        %v681 = vadd.f32 %v662, %v445
        %v682 = vadd.f32 %v577, %v446
        %v683 = vadd.f32 %v579, %v447
        %v684 = vadd.f32 %v666, %v448
        %v685 = vadd.f32 %v668, %v449
        %v686 = vmax.f32 %v670, 0.0
        %v687 = vmax.f32 %v671, 0.0
        %v688 = vmax.f32 %v672, 0.0
        %v689 = vmax.f32 %v673, 0.0
        %v690 = vmax.f32 %v674, 0.0
        %v691 = vmax.f32 %v675, 0.0
        %v692 = vmax.f32 %v676, 0.0
        %v693 = vmax.f32 %v677, 0.0
        %v694 = vmax.f32 %v678, 0.0
        %v695 = vmax.f32 %v679, 0.0
        %v696 = vmax.f32 %v680, 0.0
        %v697 = vmax.f32 %v681, 0.0
        %v698 = vmax.f32 %v682, 0.0
        %v699 = vmax.f32 %v683, 0.0
        %v700 = vmax.f32 %v684, 0.0
        %v701 = vmax.f32 %v685, 0.0
        %v702 = vadd.f32 %v434, %v686
        %v703 = vadd.f32 %v435, %v687
        %v704 = vadd.f32 %v436, %v688
        %v705 = vadd.f32 %v437, %v689
        %v706 = vadd.f32 %v438, %v690
        %v707 = vadd.f32 %v439, %v691
        %v708 = vadd.f32 %v440, %v692
        %v709 = vadd.f32 %v441, %v693
        %v710 = vadd.f32 %v442, %v694
        %v711 = vadd.f32 %v443, %v695
        %v712 = vadd.f32 %v444, %v696
        %v713 = vadd.f32 %v445, %v697
        %v714 = vadd.f32 %v446, %v698
        %v715 = vadd.f32 %v447, %v699
        %v716 = vadd.f32 %v448, %v700
        %v717 = vadd.f32 %v449, %v701
        %s718 = scalar_lea.vmem %s1, 64
        %v719 = vld [vmem:[%s718] sm:$0xff]
        %v720 = vld [vmem:[%s718 + $0x8] sm:$0xff]
        %v721 = vld [vmem:[%s718 + $0x10] sm:$0xff]
        %v722 = vld [vmem:[%s718 + $0x18] sm:$0xff]
        %s723 = scalar_lea.vmem %s2, 64
        %v724 = vld [vmem:[%s723] sm:$0xff]
        %v725 = vld [vmem:[%s723 + $0x8] sm:$0xff]
        %v726 = vld [vmem:[%s723 + $0x10] sm:$0xff]
        %v727 = vld [vmem:[%s723 + $0x18] sm:$0xff]
        %729 = vset.pattern.permute.xlu0 0
        %730 = vperm.xlu0 %729, %v724
        %v731 = vpop.permute.xlu0 %730
        %734 = vset.pattern.permute.xlu0 0
        %735 = vperm.xlu0 %734, %v725
        %v736 = vpop.permute.xlu0 %735
        %739 = vset.pattern.permute.xlu0 0
        %740 = vperm.xlu0 %739, %v726
        %v741 = vpop.permute.xlu0 %740
        %744 = vset.pattern.permute.xlu0 0
        %745 = vperm.xlu0 %744, %v727
        %v746 = vpop.permute.xlu0 %745
        %v749 = vsel %vm227, %v719, 0
        %v752 = vsel %vm227, %v720, 0
        %v755 = vsel %vm227, %v721, 0
        %v758 = vsel %vm227, %v722, 0
        %760 = vmatprep.subr.mxu0 %v687
        %761 = vmatpush1.msra.mxu0 %v686
        %762 = vmatprep.subr.mxu0 %v691
        %763 = vmatpush1.msra.mxu0 %v690
        %764 = vmatprep.subr.mxu0 %v695
        %765 = vmatpush1.msra.mxu0 %v694
        %766 = vmatprep.subr.mxu0 %v699
        %767 = vmatpush1.msra.mxu0 %v698
        %768 = vmatprep.subr.mxu0 0.0
        %769 = vmatpush1.msra.mxu0 0.0
        %770 = vmatprep.subr.mxu0 0.0
        %771 = vmatpush1.msra.mxu0 0.0
        %772 = vmatprep.subr.mxu0 0.0
        %773 = vmatpush1.msra.mxu0 0.0
        %774 = vmatprep.subr.mxu0 0.0
        %775 = vmatpush1.msra.mxu0 0.0
        %776 = vmatprep.subr.mxu0 0.0
        %777 = vmatpush1.msra.mxu0 0.0
        %778 = vmatprep.subr.mxu0 0.0
        %779 = vmatpush1.msra.mxu0 0.0
        %780 = vmatprep.subr.mxu0 0.0
        %781 = vmatpush1.msra.mxu0 0.0
        %782 = vmatprep.subr.mxu0 0.0
        %783 = vmatpush1.msra.mxu0 0.0
        %784 = vmatprep.subr.mxu0 0.0
        %785 = vmatpush1.msra.mxu0 0.0
        %786 = vmatprep.subr.mxu0 0.0
        %787 = vmatpush1.msra.mxu0 0.0
        %788 = vmatprep.subr.mxu0 0.0
        %789 = vmatpush1.msra.mxu0 0.0
        %790 = vmatprep.subr.mxu0 0.0
        %791 = vmatpush1.msra.mxu0 0.0
        %792 = vmatprep.subr.mxu0 0.0
        %793 = vmatpush1.msra.mxu0 0.0
        %794 = vmatprep.subr.mxu0 0.0
        %795 = vmatpush1.msra.mxu0 0.0
        %796 = vmatprep.subr.mxu0 0.0
        %797 = vmatpush1.msra.mxu0 0.0
        %798 = vmatprep.subr.mxu0 0.0
        %799 = vmatpush1.msra.mxu0 0.0
        %800 = vmatprep.subr.mxu0 0.0
        %801 = vmatpush1.msra.mxu0 0.0
        %802 = vmatprep.subr.mxu0 0.0
        %803 = vmatpush1.msra.mxu0 0.0
        %804 = vmatprep.subr.mxu0 0.0
        %805 = vmatpush1.msra.mxu0 0.0
        %806 = vmatprep.subr.mxu0 0.0
        %807 = vmatpush1.msra.mxu0 0.0
        %808 = vmatprep.subr.mxu0 0.0
        %809 = vmatpush1.msra.mxu0 0.0
        %810 = vmatprep.subr.mxu0 0.0
        %811 = vmatpush1.msra.mxu0 0.0
        %812 = vmatprep.subr.mxu0 0.0
        %813 = vmatpush1.msra.mxu0 0.0
        %814 = vmatprep.subr.mxu0 0.0
        %815 = vmatpush1.msra.mxu0 0.0
        %816 = vmatprep.subr.mxu0 0.0
        %817 = vmatpush1.msra.mxu0 0.0
        %818 = vmatprep.subr.mxu0 0.0
        %819 = vmatpush1.msra.mxu0 0.0
        %820 = vmatprep.subr.mxu0 0.0
        %821 = vmatpush1.msra.mxu0 0.0
        %822 = vmatprep.subr.mxu0 0.0
        %823 = vmatpush1.msra.mxu0 0.0
        %824 = vmatprep.mubr.f32.mxu0 0.0
        %825 = vmatmul.mubr.f32.gmra.mrb[0].mxu0 %v749
        %v826 = vpop.f32.mrb[0].mxu0
        %v827 = vadd.f32 %v731, %v826
        %v828 = vpop.f32.mrb[0].mxu0
        %v829 = vadd.f32 %v731, %v828
        %830 = vmatprep.mubr.f32.mxu0 0.0
        %831 = vmatmul.mubr.f32.gmra.mrb[0].mxu0 %v752
        %v832 = vpop.f32.mrb[0].mxu0
        %v833 = vadd.f32 %v736, %v832
        %v834 = vpop.f32.mrb[0].mxu0
        %v835 = vadd.f32 %v736, %v834
        %836 = vmatprep.mubr.f32.mxu0 0.0
        %837 = vmatmul.mubr.f32.gmra.mrb[0].mxu0 %v755
        %v838 = vpop.f32.mrb[0].mxu0
        %v839 = vadd.f32 %v741, %v838
        %v840 = vpop.f32.mrb[0].mxu0
        %v841 = vadd.f32 %v741, %v840
        %842 = vmatprep.mubr.f32.mxu0 0.0
        %843 = vmatmul.mubr.f32.gmra.mrb[0].mxu0 %v758
        %v844 = vpop.f32.mrb[0].mxu0
        %v845 = vadd.f32 %v746, %v844
        %v846 = vpop.f32.mrb[0].mxu0
        %v847 = vadd.f32 %v746, %v846
        %848 = vdwg.mxu0
        %849 = vmatprep.subr.mxu0 %v689
        %850 = vmatpush1.msra.mxu0 %v688
        %851 = vmatprep.subr.mxu0 %v693
        %852 = vmatpush1.msra.mxu0 %v692
        %853 = vmatprep.subr.mxu0 %v697
        %854 = vmatpush1.msra.mxu0 %v696
        %855 = vmatprep.subr.mxu0 %v701
        %856 = vmatpush1.msra.mxu0 %v700
        %857 = vmatprep.subr.mxu0 0.0
        %858 = vmatpush1.msra.mxu0 0.0
        %859 = vmatprep.subr.mxu0 0.0
        %860 = vmatpush1.msra.mxu0 0.0
        %861 = vmatprep.subr.mxu0 0.0
        %862 = vmatpush1.msra.mxu0 0.0
        %863 = vmatprep.subr.mxu0 0.0
        %864 = vmatpush1.msra.mxu0 0.0
        %865 = vmatprep.subr.mxu0 0.0
        %866 = vmatpush1.msra.mxu0 0.0
        %867 = vmatprep.subr.mxu0 0.0
        %868 = vmatpush1.msra.mxu0 0.0
        %869 = vmatprep.subr.mxu0 0.0
        %870 = vmatpush1.msra.mxu0 0.0
        %871 = vmatprep.subr.mxu0 0.0
        %872 = vmatpush1.msra.mxu0 0.0
        %873 = vmatprep.subr.mxu0 0.0
        %874 = vmatpush1.msra.mxu0 0.0
        %875 = vmatprep.subr.mxu0 0.0
        %876 = vmatpush1.msra.mxu0 0.0
        %877 = vmatprep.subr.mxu0 0.0
        %878 = vmatpush1.msra.mxu0 0.0
        %879 = vmatprep.subr.mxu0 0.0
        %880 = vmatpush1.msra.mxu0 0.0
        %881 = vmatprep.subr.mxu0 0.0
        %882 = vmatpush1.msra.mxu0 0.0
        %883 = vmatprep.subr.mxu0 0.0
        %884 = vmatpush1.msra.mxu0 0.0
        %885 = vmatprep.subr.mxu0 0.0
        %886 = vmatpush1.msra.mxu0 0.0
        %887 = vmatprep.subr.mxu0 0.0
        %888 = vmatpush1.msra.mxu0 0.0
        %889 = vmatprep.subr.mxu0 0.0
        %890 = vmatpush1.msra.mxu0 0.0
        %891 = vmatprep.subr.mxu0 0.0
        %892 = vmatpush1.msra.mxu0 0.0
        %893 = vmatprep.subr.mxu0 0.0
        %894 = vmatpush1.msra.mxu0 0.0
        %895 = vmatprep.subr.mxu0 0.0
        %896 = vmatpush1.msra.mxu0 0.0
        %897 = vmatprep.subr.mxu0 0.0
        %898 = vmatpush1.msra.mxu0 0.0
        %899 = vmatprep.subr.mxu0 0.0
        %900 = vmatpush1.msra.mxu0 0.0
        %901 = vmatprep.subr.mxu0 0.0
        %902 = vmatpush1.msra.mxu0 0.0
        %903 = vmatprep.subr.mxu0 0.0
        %904 = vmatpush1.msra.mxu0 0.0
        %905 = vmatprep.subr.mxu0 0.0
        %906 = vmatpush1.msra.mxu0 0.0
        %907 = vmatprep.subr.mxu0 0.0
        %908 = vmatpush1.msra.mxu0 0.0
        %909 = vmatprep.subr.mxu0 0.0
        %910 = vmatpush1.msra.mxu0 0.0
        %911 = vmatprep.subr.mxu0 0.0
        %912 = vmatpush1.msra.mxu0 0.0
        %913 = vmatprep.mubr.f32.mxu0 0.0
        %914 = vmatmul.mubr.f32.gmra.mrb[0].mxu0 %v749
        %v915 = vpop.f32.mrb[0].mxu0
        %v916 = vadd.f32 %v731, %v915
        %v917 = vpop.f32.mrb[0].mxu0
        %v918 = vadd.f32 %v731, %v917
        %919 = vmatprep.mubr.f32.mxu0 0.0
        %920 = vmatmul.mubr.f32.gmra.mrb[0].mxu0 %v752
        %v921 = vpop.f32.mrb[0].mxu0
        %v922 = vadd.f32 %v736, %v921
        %v923 = vpop.f32.mrb[0].mxu0
        %v924 = vadd.f32 %v736, %v923
        %925 = vmatprep.mubr.f32.mxu0 0.0
        %926 = vmatmul.mubr.f32.gmra.mrb[0].mxu0 %v755
        %v927 = vpop.f32.mrb[0].mxu0
        %v928 = vadd.f32 %v741, %v927
        %v929 = vpop.f32.mrb[0].mxu0
        %v930 = vadd.f32 %v741, %v929
        %931 = vmatprep.mubr.f32.mxu0 0.0
        %932 = vmatmul.mubr.f32.gmra.mrb[0].mxu0 %v758
        %v933 = vpop.f32.mrb[0].mxu0
        %v934 = vadd.f32 %v746, %v933
        %v935 = vpop.f32.mrb[0].mxu0
        %v936 = vadd.f32 %v746, %v935
        %937 = vdwg.mxu0
        %v938 = vadd.f32 %v827, %v702
        %v939 = vadd.f32 %v829, %v703
        %v940 = vadd.f32 %v916, %v704
        %v941 = vadd.f32 %v918, %v705
        %v942 = vadd.f32 %v833, %v706
        %v943 = vadd.f32 %v835, %v707
        %v944 = vadd.f32 %v922, %v708
        %v945 = vadd.f32 %v924, %v709
        %v946 = vadd.f32 %v839, %v710
        %v947 = vadd.f32 %v841, %v711
        %v948 = vadd.f32 %v928, %v712
        %v949 = vadd.f32 %v930, %v713
        %v950 = vadd.f32 %v845, %v714
        %v951 = vadd.f32 %v847, %v715
        %v952 = vadd.f32 %v934, %v716
        %v953 = vadd.f32 %v936, %v717
        %v954 = vmax.f32 %v938, 0.0
        %v955 = vmax.f32 %v939, 0.0
        %v956 = vmax.f32 %v940, 0.0
        %v957 = vmax.f32 %v941, 0.0
        %v958 = vmax.f32 %v942, 0.0
        %v959 = vmax.f32 %v943, 0.0
        %v960 = vmax.f32 %v944, 0.0
        %v961 = vmax.f32 %v945, 0.0
        %v962 = vmax.f32 %v946, 0.0
        %v963 = vmax.f32 %v947, 0.0
        %v964 = vmax.f32 %v948, 0.0
        %v965 = vmax.f32 %v949, 0.0
        %v966 = vmax.f32 %v950, 0.0
        %v967 = vmax.f32 %v951, 0.0
        %v968 = vmax.f32 %v952, 0.0
        %v969 = vmax.f32 %v953, 0.0
        %v970 = vadd.f32 %v702, %v954
        %v971 = vadd.f32 %v703, %v955
        %v972 = vadd.f32 %v704, %v956
        %v973 = vadd.f32 %v705, %v957
        %v974 = vadd.f32 %v706, %v958
        %v975 = vadd.f32 %v707, %v959
        %v976 = vadd.f32 %v708, %v960
        %v977 = vadd.f32 %v709, %v961
        %v978 = vadd.f32 %v710, %v962
        %v979 = vadd.f32 %v711, %v963
        %v980 = vadd.f32 %v712, %v964
        %v981 = vadd.f32 %v713, %v965
        %v982 = vadd.f32 %v714, %v966
        %v983 = vadd.f32 %v715, %v967
        %v984 = vadd.f32 %v716, %v968
        %v985 = vadd.f32 %v717, %v969
        %s986 = scalar_lea.vmem %s1, 96
        %v987 = vld [vmem:[%s986] sm:$0xff]
        %v988 = vld [vmem:[%s986 + $0x8] sm:$0xff]
        %v989 = vld [vmem:[%s986 + $0x10] sm:$0xff]
        %v990 = vld [vmem:[%s986 + $0x18] sm:$0xff]
        %s991 = scalar_lea.vmem %s2, 96
        %v992 = vld [vmem:[%s991] sm:$0xff]
        %v993 = vld [vmem:[%s991 + $0x8] sm:$0xff]
        %v994 = vld [vmem:[%s991 + $0x10] sm:$0xff]
        %v995 = vld [vmem:[%s991 + $0x18] sm:$0xff]
        %997 = vset.pattern.permute.xlu0 0
        %998 = vperm.xlu0 %997, %v992
        %v999 = vpop.permute.xlu0 %998
        %1002 = vset.pattern.permute.xlu0 0
        %1003 = vperm.xlu0 %1002, %v993
        %v1004 = vpop.permute.xlu0 %1003
        %1007 = vset.pattern.permute.xlu0 0
        %1008 = vperm.xlu0 %1007, %v994
        %v1009 = vpop.permute.xlu0 %1008
        %1012 = vset.pattern.permute.xlu0 0
        %1013 = vperm.xlu0 %1012, %v995
        %v1014 = vpop.permute.xlu0 %1013
        %v1017 = vsel %vm227, %v987, 0
        %v1020 = vsel %vm227, %v988, 0
        %v1023 = vsel %vm227, %v989, 0
        %v1026 = vsel %vm227, %v990, 0
        %1028 = vmatprep.subr.mxu0 %v955
        %1029 = vmatpush1.msra.mxu0 %v954
        %1030 = vmatprep.subr.mxu0 %v959
        %1031 = vmatpush1.msra.mxu0 %v958
        %1032 = vmatprep.subr.mxu0 %v963
        %1033 = vmatpush1.msra.mxu0 %v962
        %1034 = vmatprep.subr.mxu0 %v967
        %1035 = vmatpush1.msra.mxu0 %v966
        %1036 = vmatprep.subr.mxu0 0.0
        %1037 = vmatpush1.msra.mxu0 0.0
        %1038 = vmatprep.subr.mxu0 0.0
        %1039 = vmatpush1.msra.mxu0 0.0
        %1040 = vmatprep.subr.mxu0 0.0
        %1041 = vmatpush1.msra.mxu0 0.0
        %1042 = vmatprep.subr.mxu0 0.0
        %1043 = vmatpush1.msra.mxu0 0.0
        %1044 = vmatprep.subr.mxu0 0.0
        %1045 = vmatpush1.msra.mxu0 0.0
        %1046 = vmatprep.subr.mxu0 0.0
        %1047 = vmatpush1.msra.mxu0 0.0
        %1048 = vmatprep.subr.mxu0 0.0
        %1049 = vmatpush1.msra.mxu0 0.0
        %1050 = vmatprep.subr.mxu0 0.0
        %1051 = vmatpush1.msra.mxu0 0.0
        %1052 = vmatprep.subr.mxu0 0.0
        %1053 = vmatpush1.msra.mxu0 0.0
        %1054 = vmatprep.subr.mxu0 0.0
        %1055 = vmatpush1.msra.mxu0 0.0
        %1056 = vmatprep.subr.mxu0 0.0
        %1057 = vmatpush1.msra.mxu0 0.0
        %1058 = vmatprep.subr.mxu0 0.0
        %1059 = vmatpush1.msra.mxu0 0.0
        %1060 = vmatprep.subr.mxu0 0.0
        %1061 = vmatpush1.msra.mxu0 0.0
        %1062 = vmatprep.subr.mxu0 0.0
        %1063 = vmatpush1.msra.mxu0 0.0
        %1064 = vmatprep.subr.mxu0 0.0
        %1065 = vmatpush1.msra.mxu0 0.0
        %1066 = vmatprep.subr.mxu0 0.0
        %1067 = vmatpush1.msra.mxu0 0.0
        %1068 = vmatprep.subr.mxu0 0.0
        %1069 = vmatpush1.msra.mxu0 0.0
        %1070 = vmatprep.subr.mxu0 0.0
        %1071 = vmatpush1.msra.mxu0 0.0
        %1072 = vmatprep.subr.mxu0 0.0
        %1073 = vmatpush1.msra.mxu0 0.0
        %1074 = vmatprep.subr.mxu0 0.0
        %1075 = vmatpush1.msra.mxu0 0.0
        %1076 = vmatprep.subr.mxu0 0.0
        %1077 = vmatpush1.msra.mxu0 0.0
        %1078 = vmatprep.subr.mxu0 0.0
        %1079 = vmatpush1.msra.mxu0 0.0
        %1080 = vmatprep.subr.mxu0 0.0
        %1081 = vmatpush1.msra.mxu0 0.0
        %1082 = vmatprep.subr.mxu0 0.0
        %1083 = vmatpush1.msra.mxu0 0.0
        %1084 = vmatprep.subr.mxu0 0.0
        %1085 = vmatpush1.msra.mxu0 0.0
        %1086 = vmatprep.subr.mxu0 0.0
        %1087 = vmatpush1.msra.mxu0 0.0
        %1088 = vmatprep.subr.mxu0 0.0
        %1089 = vmatpush1.msra.mxu0 0.0
        %1090 = vmatprep.subr.mxu0 0.0
        %1091 = vmatpush1.msra.mxu0 0.0
        %1092 = vmatprep.mubr.f32.mxu0 0.0
        %1093 = vmatmul.mubr.f32.gmra.mrb[0].mxu0 %v1017
        %v1094 = vpop.f32.mrb[0].mxu0
        %v1095 = vadd.f32 %v999, %v1094
        %v1096 = vpop.f32.mrb[0].mxu0
        %v1097 = vadd.f32 %v999, %v1096
        %1098 = vmatprep.mubr.f32.mxu0 0.0
        %1099 = vmatmul.mubr.f32.gmra.mrb[0].mxu0 %v1020
        %v1100 = vpop.f32.mrb[0].mxu0
        %v1101 = vadd.f32 %v1004, %v1100
        %v1102 = vpop.f32.mrb[0].mxu0
        %v1103 = vadd.f32 %v1004, %v1102
        %1104 = vmatprep.mubr.f32.mxu0 0.0
        %1105 = vmatmul.mubr.f32.gmra.mrb[0].mxu0 %v1023
        %v1106 = vpop.f32.mrb[0].mxu0
        %v1107 = vadd.f32 %v1009, %v1106
        %v1108 = vpop.f32.mrb[0].mxu0
        %v1109 = vadd.f32 %v1009, %v1108
        %1110 = vmatprep.mubr.f32.mxu0 0.0
        %1111 = vmatmul.mubr.f32.gmra.mrb[0].mxu0 %v1026
        %v1112 = vpop.f32.mrb[0].mxu0
        %v1113 = vadd.f32 %v1014, %v1112
        %v1114 = vpop.f32.mrb[0].mxu0
        %v1115 = vadd.f32 %v1014, %v1114
        %1116 = vdwg.mxu0
        %1117 = vmatprep.subr.mxu0 %v957
        %1118 = vmatpush1.msra.mxu0 %v956
        %1119 = vmatprep.subr.mxu0 %v961
        %1120 = vmatpush1.msra.mxu0 %v960
        %1121 = vmatprep.subr.mxu0 %v965
        %1122 = vmatpush1.msra.mxu0 %v964
        %1123 = vmatprep.subr.mxu0 %v969
        %1124 = vmatpush1.msra.mxu0 %v968
        %1125 = vmatprep.subr.mxu0 0.0
        %1126 = vmatpush1.msra.mxu0 0.0
        %1127 = vmatprep.subr.mxu0 0.0
        %1128 = vmatpush1.msra.mxu0 0.0
        %1129 = vmatprep.subr.mxu0 0.0
        %1130 = vmatpush1.msra.mxu0 0.0
        %1131 = vmatprep.subr.mxu0 0.0
        %1132 = vmatpush1.msra.mxu0 0.0
        %1133 = vmatprep.subr.mxu0 0.0
        %1134 = vmatpush1.msra.mxu0 0.0
        %1135 = vmatprep.subr.mxu0 0.0
        %1136 = vmatpush1.msra.mxu0 0.0
        %1137 = vmatprep.subr.mxu0 0.0
        %1138 = vmatpush1.msra.mxu0 0.0
        %1139 = vmatprep.subr.mxu0 0.0
        %1140 = vmatpush1.msra.mxu0 0.0
        %1141 = vmatprep.subr.mxu0 0.0
        %1142 = vmatpush1.msra.mxu0 0.0
        %1143 = vmatprep.subr.mxu0 0.0
        %1144 = vmatpush1.msra.mxu0 0.0
        %1145 = vmatprep.subr.mxu0 0.0
        %1146 = vmatpush1.msra.mxu0 0.0
        %1147 = vmatprep.subr.mxu0 0.0
        %1148 = vmatpush1.msra.mxu0 0.0
        %1149 = vmatprep.subr.mxu0 0.0
        %1150 = vmatpush1.msra.mxu0 0.0
        %1151 = vmatprep.subr.mxu0 0.0
        %1152 = vmatpush1.msra.mxu0 0.0
        %1153 = vmatprep.subr.mxu0 0.0
        %1154 = vmatpush1.msra.mxu0 0.0
        %1155 = vmatprep.subr.mxu0 0.0
        %1156 = vmatpush1.msra.mxu0 0.0
        %1157 = vmatprep.subr.mxu0 0.0
        %1158 = vmatpush1.msra.mxu0 0.0
        %1159 = vmatprep.subr.mxu0 0.0
        %1160 = vmatpush1.msra.mxu0 0.0
        %1161 = vmatprep.subr.mxu0 0.0
        %1162 = vmatpush1.msra.mxu0 0.0
        %1163 = vmatprep.subr.mxu0 0.0
        %1164 = vmatpush1.msra.mxu0 0.0
        %1165 = vmatprep.subr.mxu0 0.0
        %1166 = vmatpush1.msra.mxu0 0.0
        %1167 = vmatprep.subr.mxu0 0.0
        %1168 = vmatpush1.msra.mxu0 0.0
        %1169 = vmatprep.subr.mxu0 0.0
        %1170 = vmatpush1.msra.mxu0 0.0
        %1171 = vmatprep.subr.mxu0 0.0
        %1172 = vmatpush1.msra.mxu0 0.0
        %1173 = vmatprep.subr.mxu0 0.0
        %1174 = vmatpush1.msra.mxu0 0.0
        %1175 = vmatprep.subr.mxu0 0.0
        %1176 = vmatpush1.msra.mxu0 0.0
        %1177 = vmatprep.subr.mxu0 0.0
        %1178 = vmatpush1.msra.mxu0 0.0
        %1179 = vmatprep.subr.mxu0 0.0
        %1180 = vmatpush1.msra.mxu0 0.0
        %1181 = vmatprep.mubr.f32.mxu0 0.0
        %1182 = vmatmul.mubr.f32.gmra.mrb[0].mxu0 %v1017
        %v1183 = vpop.f32.mrb[0].mxu0
        %v1184 = vadd.f32 %v999, %v1183
        %v1185 = vpop.f32.mrb[0].mxu0
        %v1186 = vadd.f32 %v999, %v1185
        %1187 = vmatprep.mubr.f32.mxu0 0.0
        %1188 = vmatmul.mubr.f32.gmra.mrb[0].mxu0 %v1020
        %v1189 = vpop.f32.mrb[0].mxu0
        %v1190 = vadd.f32 %v1004, %v1189
        %v1191 = vpop.f32.mrb[0].mxu0
        %v1192 = vadd.f32 %v1004, %v1191
        %1193 = vmatprep.mubr.f32.mxu0 0.0
        %1194 = vmatmul.mubr.f32.gmra.mrb[0].mxu0 %v1023
        %v1195 = vpop.f32.mrb[0].mxu0
        %v1196 = vadd.f32 %v1009, %v1195
        %v1197 = vpop.f32.mrb[0].mxu0
        %v1198 = vadd.f32 %v1009, %v1197
        %1199 = vmatprep.mubr.f32.mxu0 0.0
        %1200 = vmatmul.mubr.f32.gmra.mrb[0].mxu0 %v1026
        %v1201 = vpop.f32.mrb[0].mxu0
        %v1202 = vadd.f32 %v1014, %v1201
        %v1203 = vpop.f32.mrb[0].mxu0
        %v1204 = vadd.f32 %v1014, %v1203
        %1205 = vdwg.mxu0
        %v1206 = vadd.f32 %v1095, %v970
        %v1207 = vadd.f32 %v1097, %v971
        %v1208 = vadd.f32 %v1184, %v972
        %v1209 = vadd.f32 %v1186, %v973
        %v1210 = vadd.f32 %v1101, %v974
        %v1211 = vadd.f32 %v1103, %v975
        %v1212 = vadd.f32 %v1190, %v976
        %v1213 = vadd.f32 %v1192, %v977
        %v1214 = vadd.f32 %v1107, %v978
        %v1215 = vadd.f32 %v1109, %v979
        %v1216 = vadd.f32 %v1196, %v980
        %v1217 = vadd.f32 %v1198, %v981
        %v1218 = vadd.f32 %v1113, %v982
        %v1219 = vadd.f32 %v1115, %v983
        %v1220 = vadd.f32 %v1202, %v984
        %v1221 = vadd.f32 %v1204, %v985
        %v1222 = vmax.f32 %v1206, 0.0
        %v1223 = vmax.f32 %v1207, 0.0
        %v1224 = vmax.f32 %v1208, 0.0
        %v1225 = vmax.f32 %v1209, 0.0
        %v1226 = vmax.f32 %v1210, 0.0
        %v1227 = vmax.f32 %v1211, 0.0
        %v1228 = vmax.f32 %v1212, 0.0
        %v1229 = vmax.f32 %v1213, 0.0
        %v1230 = vmax.f32 %v1214, 0.0
        %v1231 = vmax.f32 %v1215, 0.0
        %v1232 = vmax.f32 %v1216, 0.0
        %v1233 = vmax.f32 %v1217, 0.0
        %v1234 = vmax.f32 %v1218, 0.0
        %v1235 = vmax.f32 %v1219, 0.0
        %v1236 = vmax.f32 %v1220, 0.0
        %v1237 = vmax.f32 %v1221, 0.0
        %s1238 = scalar_lea.vmem %s1, 128
        %v1239 = vld [vmem:[%s1238] sm:$0xff]
        %v1240 = vld [vmem:[%s1238 + $0x8] sm:$0xff]
        %v1241 = vld [vmem:[%s1238 + $0x10] sm:$0xff]
        %v1242 = vld [vmem:[%s1238 + $0x18] sm:$0xff]
        %s1243 = scalar_lea.vmem %s2, 128
        %v1244 = vld [vmem:[%s1243] sm:$0xff]
        %v1245 = vld [vmem:[%s1243 + $0x8] sm:$0xff]
        %v1246 = vld [vmem:[%s1243 + $0x10] sm:$0xff]
        %v1247 = vld [vmem:[%s1243 + $0x18] sm:$0xff]
        %1249 = vset.pattern.permute.xlu0 0
        %1250 = vperm.xlu0 %1249, %v1244
        %v1251 = vpop.permute.xlu0 %1250
        %1254 = vset.pattern.permute.xlu0 0
        %1255 = vperm.xlu0 %1254, %v1245
        %v1256 = vpop.permute.xlu0 %1255
        %1258 = vset.pattern.permute.xlu0 0
        %1259 = vperm.xlu0 %1258, %v1246
        %v1260 = vpop.permute.xlu0 %1259
        %1262 = vset.pattern.permute.xlu0 0
        %1263 = vperm.xlu0 %1262, %v1247
        %v1264 = vpop.permute.xlu0 %1263
        %v1266 = vsel %vm227, %v1239, 0
        %v1269 = vsel %vm227, %v1240, 0
        %v1272 = vsel %vm227, %v1241, 0
        %v1275 = vsel %vm227, %v1242, 0
        %1277 = vmatprep.subr.mxu0 %v1223
        %1278 = vmatpush1.msra.mxu0 %v1222
        %1279 = vmatprep.subr.mxu0 %v1227
        %1280 = vmatpush1.msra.mxu0 %v1226
        %1281 = vmatprep.subr.mxu0 %v1231
        %1282 = vmatpush1.msra.mxu0 %v1230
        %1283 = vmatprep.subr.mxu0 %v1235
        %1284 = vmatpush1.msra.mxu0 %v1234
        %1285 = vmatprep.subr.mxu0 0.0
        %1286 = vmatpush1.msra.mxu0 0.0
        %1287 = vmatprep.subr.mxu0 0.0
        %1288 = vmatpush1.msra.mxu0 0.0
        %1289 = vmatprep.subr.mxu0 0.0
        %1290 = vmatpush1.msra.mxu0 0.0
        %1291 = vmatprep.subr.mxu0 0.0
        %1292 = vmatpush1.msra.mxu0 0.0
        %1293 = vmatprep.subr.mxu0 0.0
        %1294 = vmatpush1.msra.mxu0 0.0
        %1295 = vmatprep.subr.mxu0 0.0
        %1296 = vmatpush1.msra.mxu0 0.0
        %1297 = vmatprep.subr.mxu0 0.0
        %1298 = vmatpush1.msra.mxu0 0.0
        %1299 = vmatprep.subr.mxu0 0.0
        %1300 = vmatpush1.msra.mxu0 0.0
        %1301 = vmatprep.subr.mxu0 0.0
        %1302 = vmatpush1.msra.mxu0 0.0
        %1303 = vmatprep.subr.mxu0 0.0
        %1304 = vmatpush1.msra.mxu0 0.0
        %1305 = vmatprep.subr.mxu0 0.0
        %1306 = vmatpush1.msra.mxu0 0.0
        %1307 = vmatprep.subr.mxu0 0.0
        %1308 = vmatpush1.msra.mxu0 0.0
        %1309 = vmatprep.subr.mxu0 0.0
        %1310 = vmatpush1.msra.mxu0 0.0
        %1311 = vmatprep.subr.mxu0 0.0
        %1312 = vmatpush1.msra.mxu0 0.0
        %1313 = vmatprep.subr.mxu0 0.0
        %1314 = vmatpush1.msra.mxu0 0.0
        %1315 = vmatprep.subr.mxu0 0.0
        %1316 = vmatpush1.msra.mxu0 0.0
        %1317 = vmatprep.subr.mxu0 0.0
        %1318 = vmatpush1.msra.mxu0 0.0
        %1319 = vmatprep.subr.mxu0 0.0
        %1320 = vmatpush1.msra.mxu0 0.0
        %1321 = vmatprep.subr.mxu0 0.0
        %1322 = vmatpush1.msra.mxu0 0.0
        %1323 = vmatprep.subr.mxu0 0.0
        %1324 = vmatpush1.msra.mxu0 0.0
        %1325 = vmatprep.subr.mxu0 0.0
        %1326 = vmatpush1.msra.mxu0 0.0
        %1327 = vmatprep.subr.mxu0 0.0
        %1328 = vmatpush1.msra.mxu0 0.0
        %1329 = vmatprep.subr.mxu0 0.0
        %1330 = vmatpush1.msra.mxu0 0.0
        %1331 = vmatprep.subr.mxu0 0.0
        %1332 = vmatpush1.msra.mxu0 0.0
        %1333 = vmatprep.subr.mxu0 0.0
        %1334 = vmatpush1.msra.mxu0 0.0
        %1335 = vmatprep.subr.mxu0 0.0
        %1336 = vmatpush1.msra.mxu0 0.0
        %1337 = vmatprep.subr.mxu0 0.0
        %1338 = vmatpush1.msra.mxu0 0.0
        %1339 = vmatprep.subr.mxu0 0.0
        %1340 = vmatpush1.msra.mxu0 0.0
        %1341 = vmatprep.mubr.f32.mxu0 0.0
        %1342 = vmatmul.mubr.f32.gmra.mrb[0].mxu0 %v1266
        %v1343 = vpop.f32.mrb[0].mxu0
        %v1344 = vadd.f32 %v1251, %v1343
        %v1345 = vpop.f32.mrb[0].mxu0
        %v1346 = vadd.f32 %v1251, %v1345
        %1347 = vmatprep.mubr.f32.mxu0 0.0
        %1348 = vmatmul.mubr.f32.gmra.mrb[0].mxu0 %v1269
        %v1349 = vpop.f32.mrb[0].mxu0
        %v1350 = vpop.f32.mrb[0].mxu0
        %1351 = vmatprep.mubr.f32.mxu0 0.0
        %1352 = vmatmul.mubr.f32.gmra.mrb[0].mxu0 %v1272
        %v1353 = vpop.f32.mrb[0].mxu0
        %v1354 = vpop.f32.mrb[0].mxu0
        %1355 = vmatprep.mubr.f32.mxu0 0.0
        %1356 = vmatmul.mubr.f32.gmra.mrb[0].mxu0 %v1275
        %v1357 = vpop.f32.mrb[0].mxu0
        %v1358 = vpop.f32.mrb[0].mxu0
        %1359 = vdwg.mxu0
        %1360 = vmatprep.subr.mxu0 %v1225
        %1361 = vmatpush1.msra.mxu0 %v1224
        %1362 = vmatprep.subr.mxu0 %v1229
        %1363 = vmatpush1.msra.mxu0 %v1228
        %1364 = vmatprep.subr.mxu0 %v1233
        %1365 = vmatpush1.msra.mxu0 %v1232
        %1366 = vmatprep.subr.mxu0 %v1237
        %1367 = vmatpush1.msra.mxu0 %v1236
        %1368 = vmatprep.subr.mxu0 0.0
        %1369 = vmatpush1.msra.mxu0 0.0
        %1370 = vmatprep.subr.mxu0 0.0
        %1371 = vmatpush1.msra.mxu0 0.0
        %1372 = vmatprep.subr.mxu0 0.0
        %1373 = vmatpush1.msra.mxu0 0.0
        %1374 = vmatprep.subr.mxu0 0.0
        %1375 = vmatpush1.msra.mxu0 0.0
        %1376 = vmatprep.subr.mxu0 0.0
        %1377 = vmatpush1.msra.mxu0 0.0
        %1378 = vmatprep.subr.mxu0 0.0
        %1379 = vmatpush1.msra.mxu0 0.0
        %1380 = vmatprep.subr.mxu0 0.0
        %1381 = vmatpush1.msra.mxu0 0.0
        %1382 = vmatprep.subr.mxu0 0.0
        %1383 = vmatpush1.msra.mxu0 0.0
        %1384 = vmatprep.subr.mxu0 0.0
        %1385 = vmatpush1.msra.mxu0 0.0
        %1386 = vmatprep.subr.mxu0 0.0
        %1387 = vmatpush1.msra.mxu0 0.0
        %1388 = vmatprep.subr.mxu0 0.0
        %1389 = vmatpush1.msra.mxu0 0.0
        %1390 = vmatprep.subr.mxu0 0.0
        %1391 = vmatpush1.msra.mxu0 0.0
        %1392 = vmatprep.subr.mxu0 0.0
        %1393 = vmatpush1.msra.mxu0 0.0
        %1394 = vmatprep.subr.mxu0 0.0
        %1395 = vmatpush1.msra.mxu0 0.0
        %1396 = vmatprep.subr.mxu0 0.0
        %1397 = vmatpush1.msra.mxu0 0.0
        %1398 = vmatprep.subr.mxu0 0.0
        %1399 = vmatpush1.msra.mxu0 0.0
        %1400 = vmatprep.subr.mxu0 0.0
        %1401 = vmatpush1.msra.mxu0 0.0
        %1402 = vmatprep.subr.mxu0 0.0
        %1403 = vmatpush1.msra.mxu0 0.0
        %1404 = vmatprep.subr.mxu0 0.0
        %1405 = vmatpush1.msra.mxu0 0.0
        %1406 = vmatprep.subr.mxu0 0.0
        %1407 = vmatpush1.msra.mxu0 0.0
        %1408 = vmatprep.subr.mxu0 0.0
        %1409 = vmatpush1.msra.mxu0 0.0
        %1410 = vmatprep.subr.mxu0 0.0
        %1411 = vmatpush1.msra.mxu0 0.0
        %1412 = vmatprep.subr.mxu0 0.0
        %1413 = vmatpush1.msra.mxu0 0.0
        %1414 = vmatprep.subr.mxu0 0.0
        %1415 = vmatpush1.msra.mxu0 0.0
        %1416 = vmatprep.subr.mxu0 0.0
        %1417 = vmatpush1.msra.mxu0 0.0
        %1418 = vmatprep.subr.mxu0 0.0
        %1419 = vmatpush1.msra.mxu0 0.0
        %1420 = vmatprep.subr.mxu0 0.0
        %1421 = vmatpush1.msra.mxu0 0.0
        %1422 = vmatprep.subr.mxu0 0.0
        %1423 = vmatpush1.msra.mxu0 0.0
        %1424 = vmatprep.mubr.f32.mxu0 0.0
        %1425 = vmatmul.mubr.f32.gmra.mrb[0].mxu0 %v1266
        %v1426 = vpop.f32.mrb[0].mxu0
        %v1427 = vadd.f32 %v1251, %v1426
        %v1428 = vpop.f32.mrb[0].mxu0
        %v1429 = vadd.f32 %v1251, %v1428
        %1430 = vmatprep.mubr.f32.mxu0 0.0
        %1431 = vmatmul.mubr.f32.gmra.mrb[0].mxu0 %v1269
        %v1432 = vpop.f32.mrb[0].mxu0
        %v1433 = vpop.f32.mrb[0].mxu0
        %1434 = vmatprep.mubr.f32.mxu0 0.0
        %1435 = vmatmul.mubr.f32.gmra.mrb[0].mxu0 %v1272
        %v1436 = vpop.f32.mrb[0].mxu0
        %v1437 = vpop.f32.mrb[0].mxu0
        %1438 = vmatprep.mubr.f32.mxu0 0.0
        %1439 = vmatmul.mubr.f32.gmra.mrb[0].mxu0 %v1275
        %v1440 = vpop.f32.mrb[0].mxu0
        %v1441 = vpop.f32.mrb[0].mxu0
        %1442 = vdwg.mxu0
        %1443 = vst [vmem:[%s188] sm:$0xff] %v1344
        %1444 = vst [vmem:[%s188 + $0x8] sm:$0xff] %v1346
        %1445 = vst [vmem:[%s188 + $0x10] sm:$0xff] %v1427
        %1446 = vst [vmem:[%s188 + $0x18] sm:$0xff] %v1429
        %s1447 = sand.u32 %s96, 1
        %s1448 = scalar_lea.sflag [#allocation4], %s1447
        %s1449 = sand.u32 %s96, 1
        %s1450 = smul.addr %s1449, 32
        %s1451 = scalar_lea.vmem [#allocation5], %s1450
        // Predicated region
        $region37: #{fully_skip_forward.1} parent=31 // pred_check
          %p1452 = pneg %p106
        $region38: #{fully_skip_forward.1} parent=31 // pred_check_branch
          %1454 = sbr.rel (%p1452) target = $region40
        $region39: #{fully_skip_forward.1} parent=31 // pred_region
          %s1455 = smul.u32 4, %s20
          %s1457 = ssub.s32 512, 512
          %1458 = vsyncadd %s1448, %s1457
          %s1459 = smul.addr %s1455, 128
          %s1460 = scalar_lea.hbm %s3, %s1459
          %s1462 = sshll.u32 %s1451, 4
          %s1463 = int_to_ptr.vmem [resolvable:$true] %s1462
          %1465 = dma.vmem_to_hbm [thread:$0]  %s1463, 512, %s1460, %s1448
        $region40: #{fully_skip_forward.1} parent=31 // pred_fallthru
          _
      $region32: #{fully_skip_forward.1} parent=5 // pred_fallthru
        _
      %p1466 = scmp.le.s32.totalorder 2, %s15
      // Predicated region
      $region41: #{fully_skip_forward.1} parent=5 // pred_check
        %p1467 = pneg %p1466
      $region42: #{fully_skip_forward.1} parent=5 // pred_check_branch
        %1469 = sbr.rel (%p1467) target = $region44
      $region43: #{fully_skip_forward.1} parent=5 // pred_region
        %s1470 = ssub.s32 %s15, 2
        // Predicated region
        $region45: #{fully_skip_forward.1} parent=43 // pred_check
          %p1471 = pneg %p112
        $region46: #{fully_skip_forward.1} parent=43 // pred_check_branch
          %1473 = sbr.rel (%p1471) target = $region48
        $region47: #{fully_skip_forward.1} parent=43 // pred_region
          %s1474 = sand.u32 %s97, 1
          %s1475 = scalar_lea.sflag [#allocation4], %s1474
          %s1476 = sand.u32 %s97, 1
          %s1477 = smul.addr %s1476, 32
          %s1478 = scalar_lea.vmem [#allocation5], %s1477
          %1479 = dma.done %s1475, 512
        $region48: #{fully_skip_forward.1} parent=43 // pred_fallthru
          _
      $region44: #{fully_skip_forward.1} parent=5 // pred_fallthru
        _
    $region6: #{fully_skip_forward.1} parent=1 // loop_footer
      %s19 = sadd.s32 1, %s15
    $region7: #{fully_skip_forward.1} parent=1 // loop_footer_branch
      %14 = sbr.rel target = $region3
    $region8: #{fully_skip_forward.1} parent=1 // loop_exit
      _
    %1480 = vsyncpa [#allocation3], 1
    %s1481 = scalar_lea.sflag [#allocation3], 1
    %1482 = vsyncpa %s1481, 1
    %1483 = vsyncpa [#allocation4], 1
    %s1484 = scalar_lea.sflag [#allocation4], 1
    %1485 = vsyncpa %s1484, 1

</llo_original>
